<compile_context>
chip_gen: v5e
topology: v5e:2x2
jax: 0.10.0
libtpu: 0.0.40
codegen_flags: <defaults>
</compile_context>

<pallas_src>
import functools

import jax
import jax.numpy as jnp
from jax import lax
from jax.experimental import pallas as pl
from jax.experimental.pallas import tpu as pltpu


def _round_up(v, m):
    return (v + m - 1) // m * m


def _pad_to(arr, shape):
    return jnp.pad(arr, [(0, t - s) for s, t in zip(arr.shape, shape)])


def _eye(n, m, dtype):
    row = lax.broadcasted_iota(jnp.int32, (n, m), 0)
    col = lax.broadcasted_iota(jnp.int32, (n, m), 1)
    return (row == col).astype(dtype)


# -----------------------------------------------------------------------------
# Fused kernel: normalized Laplacian + lambda_max power iteration + two
# Chebyshev graph-conv layers (+ ReLU), all in one pallas_call.
# -----------------------------------------------------------------------------
def cheb_gcn_fused_kernel(scale_ref, adj_ref, x_ref, w1_ref, b1_ref, w2_ref,
                          b2_ref, out_ref, eig_ref, slab1_ref, slab2_ref,
                          *, k_order, power_iters, mxu_dtype):
    f32 = jnp.float32
    adj = adj_ref[...]                                   # [N, N] f32
    n = adj.shape[0]

    # ---- normalized Laplacian  L = I - D^-1/2 A D^-1/2 ----------------------
    # Row degrees via a lane reduction, column degrees via a sublane reduction
    # (A assumed symmetric, consistent with the eig assumption below) -> no
    # XLU transpose.  rsqrt on the EUP; the >0 guard reproduces the
    # reference's "inf -> 0" handling and keeps every term finite, so the
    # reference's NaN scrub is a no-op and is dropped.
    deg_r = jnp.sum(adj, axis=1, keepdims=True)          # [N, 1]
    deg_c = jnp.sum(adj, axis=0, keepdims=True)          # [1, N]
    dr = jnp.where(deg_r > 0.0, lax.rsqrt(deg_r), 0.0)
    dc = jnp.where(deg_c > 0.0, lax.rsqrt(deg_c), 0.0)
    lap = _eye(n, n, f32) - dr * adj * dc                # stays in VMEM/vregs

    # ---- 2 / max|eig(L)| -----------------------------------------------------
    if power_iters > 0:
        # Block power iteration (f32 MXU matvecs) + Rayleigh quotients.
        # Deterministic start block = leading identity columns: at least one
        # column has overlap >= 1/sqrt(N) with the dominant eigenvector.
        b = min(n, 128)
        v0 = _eye(n, b, f32)

        def body(_, v):
            w = jnp.dot(lap, v, preferred_element_type=f32)
            return w / jnp.maximum(jnp.max(jnp.abs(w)), 1e-30)

        v = lax.fori_loop(0, power_iters, body, v0)
        w = jnp.dot(lap, v, preferred_element_type=f32)
        num = jnp.sum(v * w, axis=0, keepdims=True)      # [1, b]
        den = jnp.sum(v * v, axis=0, keepdims=True)      # [1, b]
        rq = jnp.where(den > 0.0, jnp.abs(num) / den, 0.0)
        eig_max = jnp.max(rq)
        scale = 2.0 / eig_max
    else:
        scale = scale_ref[0]                             # exact value from SMEM
        eig_max = 2.0 / scale
    eig_ref[...] = jnp.full((1, 1), eig_max, dtype=f32)

    # ---- Chebyshev layers ----------------------------------------------------
    # gso = scale*L - I is never materialized:  gso@t == scale*(L@t) - t, so
    #   T_1 = scale*(L@x) - x,   T_k = 2*scale*(L@T_{k-1}) - 2*T_{k-1} - T_{k-2}.
    # MXU operands are cast to `mxu_dtype` (bf16 by default); accumulation,
    # the recurrence, bias add and ReLU stay in f32.  All K terms are packed
    # into a [N, K*F] VMEM slab so each layer is one weight matmul.
    lap_mxu = lap.astype(mxu_dtype)

    def cheb_layer(t0, slab_ref, w_ref, b_ref):
        fd = t0.shape[1]
        slab_ref[:, 0:fd] = t0.astype(mxu_dtype)
        if k_order > 1:
            lx = jnp.dot(lap_mxu, t0.astype(mxu_dtype),
                         preferred_element_type=f32)
            t_prev, t_cur = t0, scale * lx - t0
            slab_ref[:, fd:2 * fd] = t_cur.astype(mxu_dtype)
            for k in range(2, k_order):
                lt = jnp.dot(lap_mxu, t_cur.astype(mxu_dtype),
                             preferred_element_type=f32)
                t_next = 2.0 * scale * lt - 2.0 * t_cur - t_prev
                slab_ref[:, k * fd:(k + 1) * fd] = t_next.astype(mxu_dtype)
                t_prev, t_cur = t_cur, t_next
        return jnp.dot(slab_ref[...], w_ref[...],
                       preferred_element_type=f32) + b_ref[...]

    # TODO(synk): training-mode dropout (random mask + 1/(1-p) rescale) not
    # implemented; eval-mode dropout is the identity.
    h = jnp.maximum(cheb_layer(x_ref[...], slab1_ref, w1_ref, b1_ref), 0.0)
    out = cheb_layer(h, slab2_ref, w2_ref, b2_ref)
    out_ref[...] = out.astype(out_ref.dtype)


def _fused_vmem_limit_bytes(n, fp, hp, op, k_order, mxu_itemsize):
    """vmem_limit_bytes derived from the actual (padded) buffer sizes.

    v7x has only 64 MiB of VMEM per TensorCore, so cap there; v5e's default
    scoped limit is 16 MiB, so always request at least 32 MiB.
    """
    f32 = 4
    b = min(n, 128)
    resident = (
        f32 * n * n                                      # adjacency tile
        + f32 * n * fp + f32 * n * op                    # x in, out
        + mxu_itemsize * k_order * (fp * hp + hp * op)   # packed weight slabs
        + f32 * (hp + op)                                # biases
        + mxu_itemsize * k_order * n * (fp + hp)         # Chebyshev-term slabs
        + f32 * n * n + mxu_itemsize * n * n             # lap (f32) + MXU copy
        + 2 * f32 * n * b                                # power-iteration block
        + 4 * f32 * n * max(fp, hp)                      # recurrence temps / h
    )
    total = int(1.5 * resident) + (4 << 20)              # compiler-temp headroom
    return min(64 << 20, max(32 << 20, total))


def reference_laplacian(adj):
    n = adj.shape[0]
    d = jnp.sum(adj, axis=1)
    d_inv_sqrt = jnp.power(d, -0.5)
    d_inv_sqrt = jnp.where(jnp.isinf(d_inv_sqrt), 0.0, d_inv_sqrt)
    lap = (jnp.eye(n, dtype=jnp.float32)
           - d_inv_sqrt[:, None] * adj * d_inv_sqrt[None, :])
    return jnp.where(jnp.isnan(lap), 0.0, lap)


def cheb_gcn_forward(x, adj, params, *, k_order, power_iters=256,
                     mxu_dtype=jnp.bfloat16):
    """Fused Cheb_GCN forward.  Returns (out [N, out_channels] f32, eig_max).

    power_iters > 0  -> lambda_max estimated in-kernel (single fused launch,
                        no host sync).
    power_iters == 0 -> exact lambda_max via eigvalsh outside Pallas (assumes
                        a symmetric adjacency, like the in-kernel degree trick).
    """
    n, f_in = x.shape
    hidden = params["w1"].shape[2]
    out_ch = params["w2"].shape[2]

    adj = adj.astype(jnp.float32)
    x = x.astype(jnp.float32)

    npad = _round_up(n, 8)            # sublane alignment; zero rows/cols are inert
    fp, hp, op = (_round_up(d, 128) for d in (f_in, hidden, out_ch))

    adj_p = _pad_to(adj, (npad, npad))
    x_p = _pad_to(x, (npad, fp))
    # Per-order weights packed into [K*F_in, F_out] slabs so each layer is a
    # single MXU matmul against the [N, K*F_in] Chebyshev-term slab.
    w1_slab = _pad_to(params["w1"].astype(jnp.float32),
                      (k_order, fp, hp)).reshape(k_order * fp, hp).astype(mxu_dtype)
    w2_slab = _pad_to(params["w2"].astype(jnp.float32),
                      (k_order, hp, op)).reshape(k_order * hp, op).astype(mxu_dtype)
    b1_p = _pad_to(params["b1"].astype(jnp.float32).reshape(1, hidden), (1, hp))
    b2_p = _pad_to(params["b2"].astype(jnp.float32).reshape(1, out_ch), (1, op))

    if power_iters > 0:
        scale = jnp.zeros((1,), jnp.float32)             # unused in this mode
    else:
        # TODO(synk): torch.linalg.eigvals (general dense eigendecomposition)
        # has no Pallas/TPU equivalent; the exact path assumes a symmetric
        # adjacency and uses eigvalsh outside Pallas.
        eig = jnp.max(jnp.abs(jnp.linalg.eigvalsh(reference_laplacian(adj))))
        scale = (2.0 / eig).astype(jnp.float32).reshape(1)

    kernel = functools.partial(cheb_gcn_fused_kernel, k_order=k_order,
                               power_iters=power_iters, mxu_dtype=mxu_dtype)
    vmem_limit = _fused_vmem_limit_bytes(npad, fp, hp, op, k_order,
                                         jnp.dtype(mxu_dtype).itemsize)

    out_p, eig_out = pl.pallas_call(
        kernel,
        out_shape=(jax.ShapeDtypeStruct((npad, op), jnp.float32),
                   jax.ShapeDtypeStruct((1, 1), jnp.float32)),
        in_specs=[
            pl.BlockSpec(memory_space=pltpu.MemorySpace.SMEM),    # 2/eig_max
            pl.BlockSpec((npad, npad), lambda: (0, 0)),           # adjacency
            pl.BlockSpec((npad, fp), lambda: (0, 0)),             # x (padded)
            pl.BlockSpec((k_order * fp, hp), lambda: (0, 0)),     # W1 slab
            pl.BlockSpec((1, hp), lambda: (0, 0)),                # b1
            pl.BlockSpec((k_order * hp, op), lambda: (0, 0)),     # W2 slab
            pl.BlockSpec((1, op), lambda: (0, 0)),                # b2
        ],
        out_specs=(pl.BlockSpec((npad, op), lambda: (0, 0)),
                   pl.BlockSpec((1, 1), lambda: (0, 0))),
        scratch_shapes=[pltpu.VMEM((npad, k_order * fp), mxu_dtype),
                        pltpu.VMEM((npad, k_order * hp), mxu_dtype)],
        compiler_params=pltpu.CompilerParams(vmem_limit_bytes=vmem_limit),
    )(scale, adj_p, x_p, w1_slab, b1_p, w2_slab, b2_p)
    return out_p[:n, :out_ch], eig_out[0, 0]


# -----------------------------------------------------------------------------
# Plain-JAX reference (mirrors the PyTorch module, eval mode).
# -----------------------------------------------------------------------------
def cheb_gcn_reference(x, adj, params, *, k_order, eig_max=None):
    n = adj.shape[0]
    lap = reference_laplacian(adj)
    if eig_max is None:
        eig_max = jnp.max(jnp.abs(jnp.linalg.eigvalsh(lap)))   # symmetric adj
    gso = 2.0 / eig_max * lap - jnp.eye(n, dtype=jnp.float32)

    def cheb_conv(xin, w, b):
        terms = [xin]
        if k_order > 1:
            terms.append(gso @ xin)
        for _ in range(2, k_order):
            terms.append(2.0 * (gso @ terms[-1]) - terms[-2])
        out = b
        for k in range(k_order):
            out = out + terms[k] @ w[k]
        return out

    h = jnp.maximum(cheb_conv(x, params["w1"], params["b1"]), 0.0)
    return cheb_conv(h, params["w2"], params["b2"])


if __name__ == "__main__":
    N = 128          # graph nodes (lane-aligned)
    DIM_EMB = 16     # input feature dim
    HIDDEN = 32      # hidden dim
    OUT_CH = 8       # output channels
    K = 3            # Chebyshev order
    # P (dropout prob) is irrelevant in eval mode.

    key = jax.random.PRNGKey(0)
    kx, ka, kw1, kb1, kw2, kb2 = jax.random.split(key, 6)

    x = jax.random.normal(kx, (N, DIM_EMB), dtype=jnp.float32)
    a = jax.random.uniform(ka, (N, N), dtype=jnp.float32, minval=0.1, maxval=1.0)
    adj = 0.5 * (a + a.T)                    # symmetric, strictly positive degrees
    assert bool(jnp.allclose(adj, adj.T)), "eig path assumes symmetric adjacency"

    # ChebGraphConv init: uniform(-1/sqrt(out_features), 1/sqrt(out_features))
    s1 = 1.0 / jnp.sqrt(jnp.float32(HIDDEN))
    s2 = 1.0 / jnp.sqrt(jnp.float32(OUT_CH))
    params = {
        "w1": jax.random.uniform(kw1, (K, DIM_EMB, HIDDEN), jnp.float32, -s1, s1),
        "b1": jax.random.uniform(kb1, (HIDDEN,), jnp.float32, -s1, s1),
        "w2": jax.random.uniform(kw2, (K, HIDDEN, OUT_CH), jnp.float32, -s2, s2),
        "b2": jax.random.uniform(kb2, (OUT_CH,), jnp.float32, -s2, s2),
    }

    ref = cheb_gcn_reference(x, adj, params, k_order=K)
    eig_exact = float(jnp.max(jnp.abs(jnp.linalg.eigvalsh(reference_laplacian(adj)))))

    # 1) Strict-semantics check: f32 MXU operands + exact lambda_max.
    out_exact, _ = cheb_gcn_forward(x, adj, params, k_order=K,
                                    power_iters=0, mxu_dtype=jnp.float32)
    out_exact = jax.block_until_ready(out_exact)
    assert out_exact.shape == (N, OUT_CH)
    err_exact = float(jnp.max(jnp.abs(out_exact - ref)))
    assert jnp.allclose(out_exact, ref, atol=1e-3, rtol=1e-3), \
        f"strict path max abs err {err_exact}"

    # 2) Fast path (default): bf16 MXU operands + in-kernel power iteration,
    #    one fused launch, no host-side eig / sync.
    out_fast, eig_est = cheb_gcn_forward(x, adj, params, k_order=K)
    out_fast = jax.block_until_ready(out_fast)
    eig_est = jax.block_until_ready(eig_est)
    eig_est_f = float(eig_est)
    assert abs(eig_est_f - eig_exact) <= 3e-2 * eig_exact, \
        f"power-iteration eig {eig_est_f} vs exact {eig_exact}"
    err_fast = float(jnp.max(jnp.abs(out_fast - ref)))
    ref_mag = float(jnp.max(jnp.abs(ref)))
    # bf16 MXU operands + estimated lambda_max -> relaxed tolerance vs the
    # exact-arithmetic reference (strict equivalence is covered by check 1).
    assert err_fast <= 8e-2 * max(ref_mag, 1.0), \
        f"fast path max abs err {err_fast} (ref magnitude {ref_mag})"

    print("KERNEL_OK")
</pallas_src>

<mosaic_0001>
module attributes {stable_mosaic.version = 11 : i64} {
  func.func @cheb_gcn_fused_kernel(%arg0: memref<1xf32, #tpu.memory_space<smem>>, %arg1: memref<128x128xf32, #tpu.memory_space<vmem>>, %arg2: memref<128x128xf32, #tpu.memory_space<vmem>>, %arg3: memref<384x128xf32, #tpu.memory_space<vmem>>, %arg4: memref<1x128xf32, #tpu.memory_space<vmem>>, %arg5: memref<384x128xf32, #tpu.memory_space<vmem>>, %arg6: memref<1x128xf32, #tpu.memory_space<vmem>>, %arg7: memref<128x128xf32, #tpu.memory_space<vmem>>, %arg8: memref<1x1xf32, #tpu.memory_space<vmem>>, %arg9: memref<128x384xf32, #tpu.memory_space<vmem>>, %arg10: memref<128x384xf32, #tpu.memory_space<vmem>>) attributes {dimension_semantics = [], scalar_prefetch = 0 : i64, scratch_operands = 2 : i64, tpu.core_type = #tpu.core_type<tc>} {
    %c0 = arith.constant 0 : index
    %c0_0 = arith.constant 0 : index
    %0 = vector.load %arg1[%c0, %c0_0] : memref<128x128xf32, #tpu.memory_space<vmem>>, vector<128x128xf32>
    %cst = arith.constant dense<0.000000e+00> : vector<128xf32>
    %1 = vector.multi_reduction <add>, %0, %cst [1] : vector<128x128xf32> to vector<128xf32>
    %2 = vector.shape_cast %1 : vector<128xf32> to vector<128x1xf32>
    %cst_1 = arith.constant dense<0.000000e+00> : vector<128xf32>
    %3 = vector.multi_reduction <add>, %0, %cst_1 [0] : vector<128x128xf32> to vector<128xf32>
    %4 = vector.shape_cast %3 : vector<128xf32> to vector<1x128xf32>
    %cst_2 = arith.constant 0.000000e+00 : f32
    %5 = vector.broadcast %cst_2 : f32 to vector<128x1xf32>
    %6 = arith.cmpf ogt, %2, %5 : vector<128x1xf32>
    %7 = math.rsqrt %2 : vector<128x1xf32>
    %cst_3 = arith.constant 0.000000e+00 : f32
    %8 = vector.broadcast %cst_3 : f32 to vector<128x1xf32>
    %9 = arith.select %6, %7, %8 : vector<128x1xi1>, vector<128x1xf32>
    %cst_4 = arith.constant 0.000000e+00 : f32
    %10 = vector.broadcast %cst_4 : f32 to vector<1x128xf32>
    %11 = arith.cmpf ogt, %4, %10 : vector<1x128xf32>
    %12 = math.rsqrt %4 : vector<1x128xf32>
    %cst_5 = arith.constant 0.000000e+00 : f32
    %13 = vector.broadcast %cst_5 : f32 to vector<1x128xf32>
    %14 = arith.select %11, %12, %13 : vector<1x128xi1>, vector<1x128xf32>
    %15 = tpu.iota {dimensions = array<i32: 0>} : vector<128x128xi32>
    %16 = tpu.iota {dimensions = array<i32: 1>} : vector<128x128xi32>
    %17 = arith.cmpi eq, %15, %16 : vector<128x128xi32>
    %18 = arith.extui %17 : vector<128x128xi1> to vector<128x128xi32>
    %19 = arith.sitofp %18 : vector<128x128xi32> to vector<128x128xf32>
    %20 = vector.broadcast %9 : vector<128x1xf32> to vector<128x128xf32>
    %21 = arith.mulf %20, %0 : vector<128x128xf32>
    %22 = vector.broadcast %14 : vector<1x128xf32> to vector<128x128xf32>
    %23 = arith.mulf %21, %22 : vector<128x128xf32>
    %24 = arith.subf %19, %23 : vector<128x128xf32>
    %c0_6 = arith.constant 0 : index
    %25 = memref.load %arg0[%c0_6] : memref<1xf32, #tpu.memory_space<smem>>
    %cst_7 = arith.constant 2.000000e+00 : f32
    %26 = arith.divf %cst_7, %25 : f32
    %27 = vector.broadcast %26 : f32 to vector<1x1xf32>
    %c0_8 = arith.constant 0 : index
    %c0_9 = arith.constant 0 : index
    %28 = vector.load %arg8[%c0_8, %c0_9] : memref<1x1xf32, #tpu.memory_space<vmem>>, vector<1x1xf32>
    tpu.vector_store %arg8[%c0_8, %c0_9], %27 {strides = array<i32>} : memref<1x1xf32, #tpu.memory_space<vmem>>, vector<1x1xf32>,
    %c0_10 = arith.constant 0 : index
    %c0_11 = arith.constant 0 : index
    %29 = vector.load %arg2[%c0_10, %c0_11] : memref<128x128xf32, #tpu.memory_space<vmem>>, vector<128x128xf32>
    %c0_12 = arith.constant 0 : index
    %c0_13 = arith.constant 0 : index
    %30 = vector.load %arg9[%c0_12, %c0_13] : memref<128x384xf32, #tpu.memory_space<vmem>>, vector<128x128xf32>
    tpu.vector_store %arg9[%c0_12, %c0_13], %29 {strides = array<i32>} : memref<128x384xf32, #tpu.memory_space<vmem>>, vector<128x128xf32>,
    %cst_14 = arith.constant dense<0.000000e+00> : vector<128x128xf32>
    %31 = tpu.matmul %24, %29, %cst_14 {dimension_numbers = #tpu.dot_dimension_numbers<[1], [0], [0], [1], [0, 0, 1, 1], [], []>} : vector<128x128xf32>, vector<128x128xf32>, vector<128x128xf32> -> vector<128x128xf32>
    %32 = vector.broadcast %25 : f32 to vector<128x128xf32>
    %33 = arith.mulf %32, %31 : vector<128x128xf32>
    %34 = arith.subf %33, %29 : vector<128x128xf32>
    %c0_15 = arith.constant 0 : index
    %c128 = arith.constant 128 : index
    %35 = vector.load %arg9[%c0_15, %c128] : memref<128x384xf32, #tpu.memory_space<vmem>>, vector<128x128xf32>
    tpu.vector_store %arg9[%c0_15, %c128], %34 {strides = array<i32>} : memref<128x384xf32, #tpu.memory_space<vmem>>, vector<128x128xf32>,
    %cst_16 = arith.constant dense<0.000000e+00> : vector<128x128xf32>
    %36 = tpu.matmul %24, %34, %cst_16 {dimension_numbers = #tpu.dot_dimension_numbers<[1], [0], [0], [1], [0, 0, 1, 1], [], []>} : vector<128x128xf32>, vector<128x128xf32>, vector<128x128xf32> -> vector<128x128xf32>
    %cst_17 = arith.constant 2.000000e+00 : f32
    %37 = arith.mulf %cst_17, %25 : f32
    %38 = vector.broadcast %37 : f32 to vector<128x128xf32>
    %39 = arith.mulf %38, %36 : vector<128x128xf32>
    %cst_18 = arith.constant 2.000000e+00 : f32
    %40 = vector.broadcast %cst_18 : f32 to vector<128x128xf32>
    %41 = arith.mulf %40, %34 : vector<128x128xf32>
    %42 = arith.subf %39, %41 : vector<128x128xf32>
    %43 = arith.subf %42, %29 : vector<128x128xf32>
    %c0_19 = arith.constant 0 : index
    %c256 = arith.constant 256 : index
    %44 = vector.load %arg9[%c0_19, %c256] : memref<128x384xf32, #tpu.memory_space<vmem>>, vector<128x128xf32>
    tpu.vector_store %arg9[%c0_19, %c256], %43 {strides = array<i32>} : memref<128x384xf32, #tpu.memory_space<vmem>>, vector<128x128xf32>,
    %c0_20 = arith.constant 0 : index
    %c0_21 = arith.constant 0 : index
    %45 = vector.load %arg9[%c0_20, %c0_21] : memref<128x384xf32, #tpu.memory_space<vmem>>, vector<128x384xf32>
    %c0_22 = arith.constant 0 : index
    %c0_23 = arith.constant 0 : index
    %46 = vector.load %arg3[%c0_22, %c0_23] : memref<384x128xf32, #tpu.memory_space<vmem>>, vector<384x128xf32>
    %cst_24 = arith.constant dense<0.000000e+00> : vector<128x128xf32>
    %47 = tpu.matmul %45, %46, %cst_24 {dimension_numbers = #tpu.dot_dimension_numbers<[1], [0], [0], [1], [0, 0, 1, 1], [], []>} : vector<128x384xf32>, vector<384x128xf32>, vector<128x128xf32> -> vector<128x128xf32>
    %c0_25 = arith.constant 0 : index
    %c0_26 = arith.constant 0 : index
    %48 = vector.load %arg4[%c0_25, %c0_26] : memref<1x128xf32, #tpu.memory_space<vmem>>, vector<1x128xf32>
    %49 = vector.broadcast %48 : vector<1x128xf32> to vector<128x128xf32>
    %50 = arith.addf %47, %49 : vector<128x128xf32>
    %cst_27 = arith.constant 0.000000e+00 : f32
    %51 = vector.broadcast %cst_27 : f32 to vector<128x128xf32>
    %52 = arith.maximumf %50, %51 : vector<128x128xf32>
    %c0_28 = arith.constant 0 : index
    %c0_29 = arith.constant 0 : index
    %53 = vector.load %arg10[%c0_28, %c0_29] : memref<128x384xf32, #tpu.memory_space<vmem>>, vector<128x128xf32>
    tpu.vector_store %arg10[%c0_28, %c0_29], %52 {strides = array<i32>} : memref<128x384xf32, #tpu.memory_space<vmem>>, vector<128x128xf32>,
    %cst_30 = arith.constant dense<0.000000e+00> : vector<128x128xf32>
    %54 = tpu.matmul %24, %52, %cst_30 {dimension_numbers = #tpu.dot_dimension_numbers<[1], [0], [0], [1], [0, 0, 1, 1], [], []>} : vector<128x128xf32>, vector<128x128xf32>, vector<128x128xf32> -> vector<128x128xf32>
    %55 = vector.broadcast %25 : f32 to vector<128x128xf32>
    %56 = arith.mulf %55, %54 : vector<128x128xf32>
    %57 = arith.subf %56, %52 : vector<128x128xf32>
    %c0_31 = arith.constant 0 : index
    %c128_32 = arith.constant 128 : index
    %58 = vector.load %arg10[%c0_31, %c128_32] : memref<128x384xf32, #tpu.memory_space<vmem>>, vector<128x128xf32>
    tpu.vector_store %arg10[%c0_31, %c128_32], %57 {strides = array<i32>} : memref<128x384xf32, #tpu.memory_space<vmem>>, vector<128x128xf32>,
    %cst_33 = arith.constant dense<0.000000e+00> : vector<128x128xf32>
    %59 = tpu.matmul %24, %57, %cst_33 {dimension_numbers = #tpu.dot_dimension_numbers<[1], [0], [0], [1], [0, 0, 1, 1], [], []>} : vector<128x128xf32>, vector<128x128xf32>, vector<128x128xf32> -> vector<128x128xf32>
    %cst_34 = arith.constant 2.000000e+00 : f32
    %60 = arith.mulf %cst_34, %25 : f32
    %61 = vector.broadcast %60 : f32 to vector<128x128xf32>
    %62 = arith.mulf %61, %59 : vector<128x128xf32>
    %cst_35 = arith.constant 2.000000e+00 : f32
    %63 = vector.broadcast %cst_35 : f32 to vector<128x128xf32>
    %64 = arith.mulf %63, %57 : vector<128x128xf32>
    %65 = arith.subf %62, %64 : vector<128x128xf32>
    %66 = arith.subf %65, %52 : vector<128x128xf32>
    %c0_36 = arith.constant 0 : index
    %c256_37 = arith.constant 256 : index
    %67 = vector.load %arg10[%c0_36, %c256_37] : memref<128x384xf32, #tpu.memory_space<vmem>>, vector<128x128xf32>
    tpu.vector_store %arg10[%c0_36, %c256_37], %66 {strides = array<i32>} : memref<128x384xf32, #tpu.memory_space<vmem>>, vector<128x128xf32>,
    %c0_38 = arith.constant 0 : index
    %c0_39 = arith.constant 0 : index
    %68 = vector.load %arg10[%c0_38, %c0_39] : memref<128x384xf32, #tpu.memory_space<vmem>>, vector<128x384xf32>
    %c0_40 = arith.constant 0 : index
    %c0_41 = arith.constant 0 : index
    %69 = vector.load %arg5[%c0_40, %c0_41] : memref<384x128xf32, #tpu.memory_space<vmem>>, vector<384x128xf32>
    %cst_42 = arith.constant dense<0.000000e+00> : vector<128x128xf32>
    %70 = tpu.matmul %68, %69, %cst_42 {dimension_numbers = #tpu.dot_dimension_numbers<[1], [0], [0], [1], [0, 0, 1, 1], [], []>} : vector<128x384xf32>, vector<384x128xf32>, vector<128x128xf32> -> vector<128x128xf32>
    %c0_43 = arith.constant 0 : index
    %c0_44 = arith.constant 0 : index
    %71 = vector.load %arg6[%c0_43, %c0_44] : memref<1x128xf32, #tpu.memory_space<vmem>>, vector<1x128xf32>
    %72 = vector.broadcast %71 : vector<1x128xf32> to vector<128x128xf32>
    %73 = arith.addf %70, %72 : vector<128x128xf32>
    %c0_45 = arith.constant 0 : index
    %c0_46 = arith.constant 0 : index
    %74 = vector.load %arg7[%c0_45, %c0_46] : memref<128x128xf32, #tpu.memory_space<vmem>>, vector<128x128xf32>
    tpu.vector_store %arg7[%c0_45, %c0_46], %73 {strides = array<i32>} : memref<128x128xf32, #tpu.memory_space<vmem>>, vector<128x128xf32>,
    return
  }
}

</mosaic_0001>

<llo_original>
// kernel: tpu_custom_call.1
$region0: #{tpu_custom_call.1}
  #allocation0 [shape = 'u32[]', space=smem, size = 0x4, offset = 0x4, fixed_abs, tag = 'smem constant byte address 0x4 - core index']
  #allocation1 [shape = 'u32[72,128]{1,0:T(1,128)}', space=vmem, size = 0x9000, scoped, tag = 'internal scratch']
  #allocation2 [shape = 'f32[128,384]{1,0:T(8,128)}', space=vmem, size = 0x30000, scoped, tag = 'scratch operand']
  #allocation3 [shape = 'f32[128,384]{1,0:T(8,128)}', space=vmem, size = 0x30000, scoped, tag = 'scratch operand']
  #allocation4 [shape = 'f32[1]{0:T(128)S(6)}', space=smem, size = 0x200, scoped, tag = 'scoped memory for tpu_custom_call.1']
  %s0 = inlined_call_operand.<no memory space> [shape: f32[1], index: 0, kind: input, shape index: {}]
  %s1 = inlined_call_operand.hbm [shape: f32[128,128], index: 1, kind: input, shape index: {}]
  %s2 = inlined_call_operand.hbm [shape: f32[128,128], index: 2, kind: input, shape index: {}]
  %s3 = inlined_call_operand.hbm [shape: f32[384,128], index: 3, kind: input, shape index: {}]
  %s4 = inlined_call_operand.vmem [shape: f32[1,128], index: 4, kind: input, shape index: {}]
  %s5 = inlined_call_operand.hbm [shape: f32[384,128], index: 5, kind: input, shape index: {}]
  %s6 = inlined_call_operand.vmem [shape: f32[1,128], index: 6, kind: input, shape index: {}]
  %s7 = inlined_call_operand.hbm [shape: f32[128,128], index: 7, kind: output, shape index: {0}]
  %s8 = inlined_call_operand.hbm [shape: f32[1,1], index: 8, kind: output, shape index: {1}]
  %9 = xla_tuple %s7, %s8
  %s10 = sld [smem:[#allocation0]]
  $region62: #{tpu_custom_call.1} parent=0
    _
  %s12 = ssub.s32 1, %s10
  %s13 = scalar_select 0, %s12, %s10
  %14 = sst [smem:[#allocation4]] %s0
  $region1: #{tpu_custom_call.1} parent=0
    #allocation5 [shape = 'u8[65536]{0}', space=vmem, size = 0x10000, scoped, tag = 'input window, operand 1, single buffered']
    #allocation6 [shape = 's32[1]{0}', space=sflag, size = 0x4, scoped, tag = 'scoped memory for tpu_custom_call.1']
    #allocation7 [shape = 's32[1]{0}', space=sflag, size = 0x4, scoped, tag = 'scoped memory for tpu_custom_call.1']
    #allocation8 [shape = 'u8[65536]{0}', space=vmem, size = 0x10000, scoped, tag = 'input window, operand 2, single buffered']
    #allocation9 [shape = 's32[1]{0}', space=sflag, size = 0x4, scoped, tag = 'scoped memory for tpu_custom_call.1']
    #allocation10 [shape = 'u8[196608]{0}', space=vmem, size = 0x30000, scoped, tag = 'input window, operand 3, single buffered']
    #allocation11 [shape = 'u8[196608]{0}', space=vmem, size = 0x30000, scoped, tag = 'input window, operand 5, single buffered']
    #allocation12 [shape = 's32[1]{0}', space=sflag, size = 0x4, scoped, tag = 'scoped memory for tpu_custom_call.1']
    #allocation13 [shape = 'u8[65536]{0}', space=vmem, size = 0x10000, scoped, tag = 'output window, operand 0, single buffered']
    #allocation14 [shape = 'u8[512]{0}', space=vmem, size = 0x400, scoped, tag = 'output window, operand 1, single buffered']
    #allocation15 [shape = 's32[1]{0}', space=sflag, size = 0x4, scoped, tag = 'scoped memory for tpu_custom_call.1']
    %15 = vsyncpa [#allocation6], 0
    %16 = vsyncpa [#allocation9], 0
    %17 = vsyncpa [#allocation12], 0
    %18 = vsyncpa [#allocation7], 0
    %19 = vsyncpa [#allocation15], 0
    // Predicated region
    $region2: #{tpu_custom_call.1} parent=1 // pred_check
      _
    $region3: #{tpu_custom_call.1} parent=1 // pred_check_branch
      %21 = sbr.rel (0) target = $region5
    $region4: #{tpu_custom_call.1} parent=1 // pred_region
      _
    $region5: #{tpu_custom_call.1} parent=1 // pred_fallthru
      _
    // Predicated region
    $region6: #{tpu_custom_call.1} parent=1 // pred_check
      _
    $region7: #{tpu_custom_call.1} parent=1 // pred_check_branch
      %23 = sbr.rel (0) target = $region9
    $region8: #{tpu_custom_call.1} parent=1 // pred_region
      %25 = vsyncadd [#allocation6], 0
      %s26 = sshll.u32 %s1, 4
      %s27 = int_to_ptr.hbm [resolvable:$true] %s26
      %s28 = sshll.u32 [#allocation5], 4
      %s29 = int_to_ptr.vmem [resolvable:$true] %s28
      %34 = dma.hbm_to_vmem [thread:$0]  %s27, 2048, %s29, [#allocation6], 128, 128, 8
    $region9: #{tpu_custom_call.1} parent=1 // pred_fallthru
      _
    // Predicated region
    $region10: #{tpu_custom_call.1} parent=1 // pred_check
      _
    $region11: #{tpu_custom_call.1} parent=1 // pred_check_branch
      %36 = sbr.rel (0) target = $region13
    $region12: #{tpu_custom_call.1} parent=1 // pred_region
      %38 = vsyncadd [#allocation9], 0
      %s39 = sshll.u32 %s2, 4
      %s40 = int_to_ptr.hbm [resolvable:$true] %s39
      %s41 = sshll.u32 [#allocation8], 4
      %s42 = int_to_ptr.vmem [resolvable:$true] %s41
      %47 = dma.hbm_to_vmem [thread:$0]  %s40, 2048, %s42, [#allocation9], 128, 128, 8
    $region13: #{tpu_custom_call.1} parent=1 // pred_fallthru
      _
    // Predicated region
    $region14: #{tpu_custom_call.1} parent=1 // pred_check
      _
    $region15: #{tpu_custom_call.1} parent=1 // pred_check_branch
      %49 = sbr.rel (0) target = $region17
    $region16: #{tpu_custom_call.1} parent=1 // pred_region
      %51 = vsyncadd [#allocation9], 0
      %s52 = sshll.u32 %s3, 4
      %s53 = int_to_ptr.hbm [resolvable:$true] %s52
      %s54 = sshll.u32 [#allocation10], 4
      %s55 = int_to_ptr.vmem [resolvable:$true] %s54
      %60 = dma.hbm_to_vmem [thread:$0]  %s53, 6144, %s55, [#allocation9], 128, 128, 8
    $region17: #{tpu_custom_call.1} parent=1 // pred_fallthru
      _
    // Predicated region
    $region18: #{tpu_custom_call.1} parent=1 // pred_check
      _
    $region19: #{tpu_custom_call.1} parent=1 // pred_check_branch
      %62 = sbr.rel (0) target = $region21
    $region20: #{tpu_custom_call.1} parent=1 // pred_region
      _
    $region21: #{tpu_custom_call.1} parent=1 // pred_fallthru
      _
    // Predicated region
    $region22: #{tpu_custom_call.1} parent=1 // pred_check
      _
    $region23: #{tpu_custom_call.1} parent=1 // pred_check_branch
      %64 = sbr.rel (0) target = $region25
    $region24: #{tpu_custom_call.1} parent=1 // pred_region
      %66 = vsyncadd [#allocation12], 0
      %s67 = sshll.u32 %s5, 4
      %s68 = int_to_ptr.hbm [resolvable:$true] %s67
      %s69 = sshll.u32 [#allocation11], 4
      %s70 = int_to_ptr.vmem [resolvable:$true] %s69
      %75 = dma.hbm_to_vmem [thread:$0]  %s68, 6144, %s70, [#allocation12], 128, 128, 8
    $region25: #{tpu_custom_call.1} parent=1 // pred_fallthru
      _
    // Predicated region
    $region26: #{tpu_custom_call.1} parent=1 // pred_check
      _
    $region27: #{tpu_custom_call.1} parent=1 // pred_check_branch
      %77 = sbr.rel (0) target = $region29
    $region28: #{tpu_custom_call.1} parent=1 // pred_region
      _
    $region29: #{tpu_custom_call.1} parent=1 // pred_fallthru
      _
    // Predicated region
    $region30: #{tpu_custom_call.1} parent=1 // pred_check
      _
    $region31: #{tpu_custom_call.1} parent=1 // pred_check_branch
      %79 = sbr.rel (0) target = $region33
    $region32: #{tpu_custom_call.1} parent=1 // pred_region
      %81 = dma.done [#allocation6], 2048
    $region33: #{tpu_custom_call.1} parent=1 // pred_fallthru
      _
    // Predicated region
    $region34: #{tpu_custom_call.1} parent=1 // pred_check
      _
    $region35: #{tpu_custom_call.1} parent=1 // pred_check_branch
      %83 = sbr.rel (0) target = $region37
    $region36: #{tpu_custom_call.1} parent=1 // pred_region
      %85 = dma.done [#allocation9], 2048
    $region37: #{tpu_custom_call.1} parent=1 // pred_fallthru
      _
    // Predicated region
    $region38: #{tpu_custom_call.1} parent=1 // pred_check
      _
    $region39: #{tpu_custom_call.1} parent=1 // pred_check_branch
      %87 = sbr.rel (0) target = $region41
    $region40: #{tpu_custom_call.1} parent=1 // pred_region
      %89 = dma.done [#allocation9], 6144
    $region41: #{tpu_custom_call.1} parent=1 // pred_fallthru
      _
    // Predicated region
    $region42: #{tpu_custom_call.1} parent=1 // pred_check
      _
    $region43: #{tpu_custom_call.1} parent=1 // pred_check_branch
      %91 = sbr.rel (0) target = $region45
    $region44: #{tpu_custom_call.1} parent=1 // pred_region
      %93 = dma.done [#allocation12], 6144
    $region45: #{tpu_custom_call.1} parent=1 // pred_fallthru
      _
    %v94 = vld [vmem:[#allocation5] sm:$0xff]
    %v95 = vld [vmem:[#allocation5 + $0x8] sm:$0xff]
    %v96 = vld [vmem:[#allocation5 + $0x10] sm:$0xff]
    %v97 = vld [vmem:[#allocation5 + $0x18] sm:$0xff]
    %v98 = vld [vmem:[#allocation5 + $0x20] sm:$0xff]
    %v99 = vld [vmem:[#allocation5 + $0x28] sm:$0xff]
    %v100 = vld [vmem:[#allocation5 + $0x30] sm:$0xff]
    %v101 = vld [vmem:[#allocation5 + $0x38] sm:$0xff]
    %v102 = vld [vmem:[#allocation5 + $0x40] sm:$0xff]
    %v103 = vld [vmem:[#allocation5 + $0x48] sm:$0xff]
    %v104 = vld [vmem:[#allocation5 + $0x50] sm:$0xff]
    %v105 = vld [vmem:[#allocation5 + $0x58] sm:$0xff]
    %v106 = vld [vmem:[#allocation5 + $0x60] sm:$0xff]
    %v107 = vld [vmem:[#allocation5 + $0x68] sm:$0xff]
    %v108 = vld [vmem:[#allocation5 + $0x70] sm:$0xff]
    %v109 = vld [vmem:[#allocation5 + $0x78] sm:$0xff]
    %110 = vadd.xlane.f32.xlu0 %v94
    %v111 = vpop.xlane.xlu0 %110
    %112 = vadd.xlane.f32.xlu0 %v95
    %v113 = vpop.xlane.xlu0 %112
    %114 = vadd.xlane.f32.xlu0 %v96
    %v115 = vpop.xlane.xlu0 %114
    %116 = vadd.xlane.f32.xlu0 %v97
    %v117 = vpop.xlane.xlu0 %116
    %118 = vadd.xlane.f32.xlu0 %v98
    %v119 = vpop.xlane.xlu0 %118
    %120 = vadd.xlane.f32.xlu0 %v99
    %v121 = vpop.xlane.xlu0 %120
    %122 = vadd.xlane.f32.xlu0 %v100
    %v123 = vpop.xlane.xlu0 %122
    %124 = vadd.xlane.f32.xlu0 %v101
    %v125 = vpop.xlane.xlu0 %124
    %126 = vadd.xlane.f32.xlu0 %v102
    %v127 = vpop.xlane.xlu0 %126
    %128 = vadd.xlane.f32.xlu0 %v103
    %v129 = vpop.xlane.xlu0 %128
    %130 = vadd.xlane.f32.xlu0 %v104
    %v131 = vpop.xlane.xlu0 %130
    %132 = vadd.xlane.f32.xlu0 %v105
    %v133 = vpop.xlane.xlu0 %132
    %134 = vadd.xlane.f32.xlu0 %v106
    %v135 = vpop.xlane.xlu0 %134
    %136 = vadd.xlane.f32.xlu0 %v107
    %v137 = vpop.xlane.xlu0 %136
    %138 = vadd.xlane.f32.xlu0 %v108
    %v139 = vpop.xlane.xlu0 %138
    %140 = vadd.xlane.f32.xlu0 %v109
    %v141 = vpop.xlane.xlu0 %140
    %v142 = vadd.f32 %v94, %v95
    %v143 = vadd.f32 %v142, %v96
    %v144 = vadd.f32 %v143, %v97
    %v145 = vadd.f32 %v144, %v98
    %v146 = vadd.f32 %v145, %v99
    %v147 = vadd.f32 %v146, %v100
    %v148 = vadd.f32 %v147, %v101
    %v149 = vadd.f32 %v148, %v102
    %v150 = vadd.f32 %v149, %v103
    %v151 = vadd.f32 %v150, %v104
    %v152 = vadd.f32 %v151, %v105
    %v153 = vadd.f32 %v152, %v106
    %v154 = vadd.f32 %v153, %v107
    %v155 = vadd.f32 %v154, %v108
    %v156 = vadd.f32 %v155, %v109
    %v157 = vrot.slane %v156, 4
    %v158 = vadd.f32 %v156, %v157
    %v159 = vrot.slane %v158, 2
    %v160 = vadd.f32 %v158, %v159
    %v161 = vrot.slane %v160, 1
    %v162 = vadd.f32 %v160, %v161
    %vm163 = vcmp.gt.f32.partialorder %v111, 0.0
    %vm164 = vcmp.gt.f32.partialorder %v113, 0.0
    %vm165 = vcmp.gt.f32.partialorder %v115, 0.0
    %vm166 = vcmp.gt.f32.partialorder %v117, 0.0
    %vm167 = vcmp.gt.f32.partialorder %v119, 0.0
    %vm168 = vcmp.gt.f32.partialorder %v121, 0.0
    %vm169 = vcmp.gt.f32.partialorder %v123, 0.0
    %vm170 = vcmp.gt.f32.partialorder %v125, 0.0
    %vm171 = vcmp.gt.f32.partialorder %v127, 0.0
    %vm172 = vcmp.gt.f32.partialorder %v129, 0.0
    %vm173 = vcmp.gt.f32.partialorder %v131, 0.0
    %vm174 = vcmp.gt.f32.partialorder %v133, 0.0
    %vm175 = vcmp.gt.f32.partialorder %v135, 0.0
    %vm176 = vcmp.gt.f32.partialorder %v137, 0.0
    %vm177 = vcmp.gt.f32.partialorder %v139, 0.0
    %vm178 = vcmp.gt.f32.partialorder %v141, 0.0
    %v179 = vrsqrt.pop %v111
    %v180 = vmul.f32 %v179, %v111
    %v181 = vmul.f32 %v180, %v179
    %v182 = vmul.f32 0.5, %v181
    %v183 = vsub.f32 1.5, %v182
    %v184 = vmul.f32 %v179, %v183
    %vm185 = vweird.f32 %v111
    %vm186 = vweird.f32 %v179
    %vm187 = vmor %vm185, %vm186
    %v188 = vsel %vm187, %v179, %v184
    %v189 = vrsqrt.pop %v113
    %v190 = vmul.f32 %v189, %v113
    %v191 = vmul.f32 %v190, %v189
    %v192 = vmul.f32 0.5, %v191
    %v193 = vsub.f32 1.5, %v192
    %v194 = vmul.f32 %v189, %v193
    %vm195 = vweird.f32 %v113
    %vm196 = vweird.f32 %v189
    %vm197 = vmor %vm195, %vm196
    %v198 = vsel %vm197, %v189, %v194
    %v199 = vrsqrt.pop %v115
    %v200 = vmul.f32 %v199, %v115
    %v201 = vmul.f32 %v200, %v199
    %v202 = vmul.f32 0.5, %v201
    %v203 = vsub.f32 1.5, %v202
    %v204 = vmul.f32 %v199, %v203
    %vm205 = vweird.f32 %v115
    %vm206 = vweird.f32 %v199
    %vm207 = vmor %vm205, %vm206
    %v208 = vsel %vm207, %v199, %v204
    %v209 = vrsqrt.pop %v117
    %v210 = vmul.f32 %v209, %v117
    %v211 = vmul.f32 %v210, %v209
    %v212 = vmul.f32 0.5, %v211
    %v213 = vsub.f32 1.5, %v212
    %v214 = vmul.f32 %v209, %v213
    %vm215 = vweird.f32 %v117
    %vm216 = vweird.f32 %v209
    %vm217 = vmor %vm215, %vm216
    %v218 = vsel %vm217, %v209, %v214
    %v219 = vrsqrt.pop %v119
    %v220 = vmul.f32 %v219, %v119
    %v221 = vmul.f32 %v220, %v219
    %v222 = vmul.f32 0.5, %v221
    %v223 = vsub.f32 1.5, %v222
    %v224 = vmul.f32 %v219, %v223
    %vm225 = vweird.f32 %v119
    %vm226 = vweird.f32 %v219
    %vm227 = vmor %vm225, %vm226
    %v228 = vsel %vm227, %v219, %v224
    %v229 = vrsqrt.pop %v121
    %v230 = vmul.f32 %v229, %v121
    %v231 = vmul.f32 %v230, %v229
    %v232 = vmul.f32 0.5, %v231
    %v233 = vsub.f32 1.5, %v232
    %v234 = vmul.f32 %v229, %v233
    %vm235 = vweird.f32 %v121
    %vm236 = vweird.f32 %v229
    %vm237 = vmor %vm235, %vm236
    %v238 = vsel %vm237, %v229, %v234
    %v239 = vrsqrt.pop %v123
    %v240 = vmul.f32 %v239, %v123
    %v241 = vmul.f32 %v240, %v239
    %v242 = vmul.f32 0.5, %v241
    %v243 = vsub.f32 1.5, %v242
    %v244 = vmul.f32 %v239, %v243
    %vm245 = vweird.f32 %v123
    %vm246 = vweird.f32 %v239
    %vm247 = vmor %vm245, %vm246
    %v248 = vsel %vm247, %v239, %v244
    %v249 = vrsqrt.pop %v125
    %v250 = vmul.f32 %v249, %v125
    %v251 = vmul.f32 %v250, %v249
    %v252 = vmul.f32 0.5, %v251
    %v253 = vsub.f32 1.5, %v252
    %v254 = vmul.f32 %v249, %v253
    %vm255 = vweird.f32 %v125
    %vm256 = vweird.f32 %v249
    %vm257 = vmor %vm255, %vm256
    %v258 = vsel %vm257, %v249, %v254
    %v259 = vrsqrt.pop %v127
    %v260 = vmul.f32 %v259, %v127
    %v261 = vmul.f32 %v260, %v259
    %v262 = vmul.f32 0.5, %v261
    %v263 = vsub.f32 1.5, %v262
    %v264 = vmul.f32 %v259, %v263
    %vm265 = vweird.f32 %v127
    %vm266 = vweird.f32 %v259
    %vm267 = vmor %vm265, %vm266
    %v268 = vsel %vm267, %v259, %v264
    %v269 = vrsqrt.pop %v129
    %v270 = vmul.f32 %v269, %v129
    %v271 = vmul.f32 %v270, %v269
    %v272 = vmul.f32 0.5, %v271
    %v273 = vsub.f32 1.5, %v272
    %v274 = vmul.f32 %v269, %v273
    %vm275 = vweird.f32 %v129
    %vm276 = vweird.f32 %v269
    %vm277 = vmor %vm275, %vm276
    %v278 = vsel %vm277, %v269, %v274
    %v279 = vrsqrt.pop %v131
    %v280 = vmul.f32 %v279, %v131
    %v281 = vmul.f32 %v280, %v279
    %v282 = vmul.f32 0.5, %v281
    %v283 = vsub.f32 1.5, %v282
    %v284 = vmul.f32 %v279, %v283
    %vm285 = vweird.f32 %v131
    %vm286 = vweird.f32 %v279
    %vm287 = vmor %vm285, %vm286
    %v288 = vsel %vm287, %v279, %v284
    %v289 = vrsqrt.pop %v133
    %v290 = vmul.f32 %v289, %v133
    %v291 = vmul.f32 %v290, %v289
    %v292 = vmul.f32 0.5, %v291
    %v293 = vsub.f32 1.5, %v292
    %v294 = vmul.f32 %v289, %v293
    %vm295 = vweird.f32 %v133
    %vm296 = vweird.f32 %v289
    %vm297 = vmor %vm295, %vm296
    %v298 = vsel %vm297, %v289, %v294
    %v299 = vrsqrt.pop %v135
    %v300 = vmul.f32 %v299, %v135
    %v301 = vmul.f32 %v300, %v299
    %v302 = vmul.f32 0.5, %v301
    %v303 = vsub.f32 1.5, %v302
    %v304 = vmul.f32 %v299, %v303
    %vm305 = vweird.f32 %v135
    %vm306 = vweird.f32 %v299
    %vm307 = vmor %vm305, %vm306
    %v308 = vsel %vm307, %v299, %v304
    %v309 = vrsqrt.pop %v137
    %v310 = vmul.f32 %v309, %v137
    %v311 = vmul.f32 %v310, %v309
    %v312 = vmul.f32 0.5, %v311
    %v313 = vsub.f32 1.5, %v312
    %v314 = vmul.f32 %v309, %v313
    %vm315 = vweird.f32 %v137
    %vm316 = vweird.f32 %v309
    %vm317 = vmor %vm315, %vm316
    %v318 = vsel %vm317, %v309, %v314
    %v319 = vrsqrt.pop %v139
    %v320 = vmul.f32 %v319, %v139
    %v321 = vmul.f32 %v320, %v319
    %v322 = vmul.f32 0.5, %v321
    %v323 = vsub.f32 1.5, %v322
    %v324 = vmul.f32 %v319, %v323
    %vm325 = vweird.f32 %v139
    %vm326 = vweird.f32 %v319
    %vm327 = vmor %vm325, %vm326
    %v328 = vsel %vm327, %v319, %v324
    %v329 = vrsqrt.pop %v141
    %v330 = vmul.f32 %v329, %v141
    %v331 = vmul.f32 %v330, %v329
    %v332 = vmul.f32 0.5, %v331
    %v333 = vsub.f32 1.5, %v332
    %v334 = vmul.f32 %v329, %v333
    %vm335 = vweird.f32 %v141
    %vm336 = vweird.f32 %v329
    %vm337 = vmor %vm335, %vm336
    %v338 = vsel %vm337, %v329, %v334
    %v339 = vsel %vm163, %v188, 0.0
    %v340 = vsel %vm164, %v198, 0.0
    %v341 = vsel %vm165, %v208, 0.0
    %v342 = vsel %vm166, %v218, 0.0
    %v343 = vsel %vm167, %v228, 0.0
    %v344 = vsel %vm168, %v238, 0.0
    %v345 = vsel %vm169, %v248, 0.0
    %v346 = vsel %vm170, %v258, 0.0
    %v347 = vsel %vm171, %v268, 0.0
    %v348 = vsel %vm172, %v278, 0.0
    %v349 = vsel %vm173, %v288, 0.0
    %v350 = vsel %vm174, %v298, 0.0
    %v351 = vsel %vm175, %v308, 0.0
    %v352 = vsel %vm176, %v318, 0.0
    %v353 = vsel %vm177, %v328, 0.0
    %v354 = vsel %vm178, %v338, 0.0
    %vm355 = vcmp.gt.f32.partialorder %v162, 0.0
    %v356 = vrsqrt.pop %v162
    %v357 = vmul.f32 %v356, %v162
    %v358 = vmul.f32 %v357, %v356
    %v359 = vmul.f32 0.5, %v358
    %v360 = vsub.f32 1.5, %v359
    %v361 = vmul.f32 %v356, %v360
    %vm362 = vweird.f32 %v162
    %vm363 = vweird.f32 %v356
    %vm364 = vmor %vm362, %vm363
    %v365 = vsel %vm364, %v356, %v361
    %v366 = vsel %vm355, %v365, 0.0
    %v367 = vlaneseq
    %v368 = vshrl.u32 %v367, 7
    %v369 = vadd.s32 %v368, 8
    %v370 = vadd.s32 %v368, 16
    %v371 = vadd.s32 %v368, 24
    %v372 = vadd.s32 %v368, 32
    %v373 = vadd.s32 %v368, 40
    %v374 = vadd.s32 %v368, 48
    %v375 = vadd.s32 %v368, 56
    %v376 = vadd.s32 %v368, 64
    %v377 = vadd.s32 %v368, 72
    %v378 = vadd.s32 %v368, 80
    %v379 = vadd.s32 %v368, 88
    %v380 = vadd.s32 %v368, 96
    %v381 = vadd.s32 %v368, 104
    %v382 = vadd.s32 %v368, 112
    %v383 = vadd.s32 %v368, 120
    %v384 = vlaneseq
    %v385 = vand.u32 %v384, 127
    %vm386 = vcmp.eq.s32.totalorder %v368, %v385
    %vm387 = vcmp.eq.s32.totalorder %v369, %v385
    %vm388 = vcmp.eq.s32.totalorder %v370, %v385
    %vm389 = vcmp.eq.s32.totalorder %v371, %v385
    %vm390 = vcmp.eq.s32.totalorder %v372, %v385
    %vm391 = vcmp.eq.s32.totalorder %v373, %v385
    %vm392 = vcmp.eq.s32.totalorder %v374, %v385
    %vm393 = vcmp.eq.s32.totalorder %v375, %v385
    %vm394 = vcmp.eq.s32.totalorder %v376, %v385
    %vm395 = vcmp.eq.s32.totalorder %v377, %v385
    %vm396 = vcmp.eq.s32.totalorder %v378, %v385
    %vm397 = vcmp.eq.s32.totalorder %v379, %v385
    %vm398 = vcmp.eq.s32.totalorder %v380, %v385
    %vm399 = vcmp.eq.s32.totalorder %v381, %v385
    %vm400 = vcmp.eq.s32.totalorder %v382, %v385
    %vm401 = vcmp.eq.s32.totalorder %v383, %v385
    %v402 = vsel %vm386, 1, 0
    %v403 = vsel %vm387, 1, 0
    %v404 = vsel %vm388, 1, 0
    %v405 = vsel %vm389, 1, 0
    %v406 = vsel %vm390, 1, 0
    %v407 = vsel %vm391, 1, 0
    %v408 = vsel %vm392, 1, 0
    %v409 = vsel %vm393, 1, 0
    %v410 = vsel %vm394, 1, 0
    %v411 = vsel %vm395, 1, 0
    %v412 = vsel %vm396, 1, 0
    %v413 = vsel %vm397, 1, 0
    %v414 = vsel %vm398, 1, 0
    %v415 = vsel %vm399, 1, 0
    %v416 = vsel %vm400, 1, 0
    %v417 = vsel %vm401, 1, 0
    %v418 = vcvt.s32.f32 %v402
    %v419 = vcvt.s32.f32 %v403
    %v420 = vcvt.s32.f32 %v404
    %v421 = vcvt.s32.f32 %v405
    %v422 = vcvt.s32.f32 %v406
    %v423 = vcvt.s32.f32 %v407
    %v424 = vcvt.s32.f32 %v408
    %v425 = vcvt.s32.f32 %v409
    %v426 = vcvt.s32.f32 %v410
    %v427 = vcvt.s32.f32 %v411
    %v428 = vcvt.s32.f32 %v412
    %v429 = vcvt.s32.f32 %v413
    %v430 = vcvt.s32.f32 %v414
    %v431 = vcvt.s32.f32 %v415
    %v432 = vcvt.s32.f32 %v416
    %v433 = vcvt.s32.f32 %v417
    %v434 = vmul.f32 %v339, %v94
    %v435 = vmul.f32 %v340, %v95
    %v436 = vmul.f32 %v341, %v96
    %v437 = vmul.f32 %v342, %v97
    %v438 = vmul.f32 %v343, %v98
    %v439 = vmul.f32 %v344, %v99
    %v440 = vmul.f32 %v345, %v100
    %v441 = vmul.f32 %v346, %v101
    %v442 = vmul.f32 %v347, %v102
    %v443 = vmul.f32 %v348, %v103
    %v444 = vmul.f32 %v349, %v104
    %v445 = vmul.f32 %v350, %v105
    %v446 = vmul.f32 %v351, %v106
    %v447 = vmul.f32 %v352, %v107
    %v448 = vmul.f32 %v353, %v108
    %v449 = vmul.f32 %v354, %v109
    %v450 = vmul.f32 %v434, %v366
    %v451 = vmul.f32 %v435, %v366
    %v452 = vmul.f32 %v436, %v366
    %v453 = vmul.f32 %v437, %v366
    %v454 = vmul.f32 %v438, %v366
    %v455 = vmul.f32 %v439, %v366
    %v456 = vmul.f32 %v440, %v366
    %v457 = vmul.f32 %v441, %v366
    %v458 = vmul.f32 %v442, %v366
    %v459 = vmul.f32 %v443, %v366
    %v460 = vmul.f32 %v444, %v366
    %v461 = vmul.f32 %v445, %v366
    %v462 = vmul.f32 %v446, %v366
    %v463 = vmul.f32 %v447, %v366
    %v464 = vmul.f32 %v448, %v366
    %v465 = vmul.f32 %v449, %v366
    %v466 = vsub.f32 %v418, %v450
    %v467 = vsub.f32 %v419, %v451
    %v468 = vsub.f32 %v420, %v452
    %v469 = vsub.f32 %v421, %v453
    %v470 = vsub.f32 %v422, %v454
    %v471 = vsub.f32 %v423, %v455
    %v472 = vsub.f32 %v424, %v456
    %v473 = vsub.f32 %v425, %v457
    %v474 = vsub.f32 %v426, %v458
    %v475 = vsub.f32 %v427, %v459
    %v476 = vsub.f32 %v428, %v460
    %v477 = vsub.f32 %v429, %v461
    %v478 = vsub.f32 %v430, %v462
    %v479 = vsub.f32 %v431, %v463
    %v480 = vsub.f32 %v432, %v464
    %v481 = vsub.f32 %v433, %v465
    %s482 = sld [smem:[#allocation4]]
    %v483 = vstv %s482
    %v484 = vrcp.pop %v483
    %v485 = vmul.f32 %v483, %v484
    %v486 = vsub.f32 1.0, %v485
    %v487 = vmul.f32 %v484, %v486
    %v488 = vadd.f32 %v484, %v487
    %vm489 = vweird.f32 %v483
    %vm490 = vweird.f32 %v484
    %vm491 = vmor %vm489, %vm490
    %v492 = vsel %vm491, %v484, %v488
    %v493 = vand.u32 2147483647, %v483
    %vm494 = vcmp.eq.f32.partialorder %v493, 8.507059e+37
    %v495 = vand.u32 %v483, 2147483648
    %v496 = vor.u32 1.1754944e-38, %v495
    %v497 = vsel %vm494, %v496, %v492
    %s498 = vtos %v497
    %s499 = smul.f32 2.0, %s498
    %v500 = vstv %s499
    %vm501 = vcmask 0
    %502 = vst.msk [vmem:[#allocation14] sm:$0x1] %vm501, %v500
    %v503 = vld [vmem:[#allocation8] sm:$0xff]
    %v504 = vld [vmem:[#allocation8 + $0x8] sm:$0xff]
    %v505 = vld [vmem:[#allocation8 + $0x10] sm:$0xff]
    %v506 = vld [vmem:[#allocation8 + $0x18] sm:$0xff]
    %v507 = vld [vmem:[#allocation8 + $0x20] sm:$0xff]
    %v508 = vld [vmem:[#allocation8 + $0x28] sm:$0xff]
    %v509 = vld [vmem:[#allocation8 + $0x30] sm:$0xff]
    %v510 = vld [vmem:[#allocation8 + $0x38] sm:$0xff]
    %v511 = vld [vmem:[#allocation8 + $0x40] sm:$0xff]
    %v512 = vld [vmem:[#allocation8 + $0x48] sm:$0xff]
    %v513 = vld [vmem:[#allocation8 + $0x50] sm:$0xff]
    %v514 = vld [vmem:[#allocation8 + $0x58] sm:$0xff]
    %v515 = vld [vmem:[#allocation8 + $0x60] sm:$0xff]
    %v516 = vld [vmem:[#allocation8 + $0x68] sm:$0xff]
    %v517 = vld [vmem:[#allocation8 + $0x70] sm:$0xff]
    %v518 = vld [vmem:[#allocation8 + $0x78] sm:$0xff]
    %519 = vst [vmem:[#allocation2] sm:$0xff] %v503
    %520 = vst [vmem:[#allocation2 + $0x18] sm:$0xff] %v504
    %521 = vst [vmem:[#allocation2 + $0x30] sm:$0xff] %v505
    %522 = vst [vmem:[#allocation2 + $0x48] sm:$0xff] %v506
    %523 = vst [vmem:[#allocation2 + $0x60] sm:$0xff] %v507
    %524 = vst [vmem:[#allocation2 + $0x78] sm:$0xff] %v508
    %525 = vst [vmem:[#allocation2 + $0x90] sm:$0xff] %v509
    %526 = vst [vmem:[#allocation2 + $0xa8] sm:$0xff] %v510
    %527 = vst [vmem:[#allocation2 + $0xc0] sm:$0xff] %v511
    %528 = vst [vmem:[#allocation2 + $0xd8] sm:$0xff] %v512
    %529 = vst [vmem:[#allocation2 + $0xf0] sm:$0xff] %v513
    %530 = vst [vmem:[#allocation2 + $0x108] sm:$0xff] %v514
    %531 = vst [vmem:[#allocation2 + $0x120] sm:$0xff] %v515
    %532 = vst [vmem:[#allocation2 + $0x138] sm:$0xff] %v516
    %533 = vst [vmem:[#allocation2 + $0x150] sm:$0xff] %v517
    %534 = vst [vmem:[#allocation2 + $0x168] sm:$0xff] %v518
    %535 = vmatpush.msra.mxu0 %v518
    %536 = vmatpush.msra.mxu0 %v517
    %537 = vmatpush.msra.mxu0 %v516
    %538 = vmatpush.msra.mxu0 %v515
    %539 = vmatpush.msra.mxu0 %v514
    %540 = vmatpush.msra.mxu0 %v513
    %541 = vmatpush.msra.mxu0 %v512
    %542 = vmatpush.msra.mxu0 %v511
    %543 = vmatpush.msra.mxu0 %v510
    %544 = vmatpush.msra.mxu0 %v509
    %545 = vmatpush.msra.mxu0 %v508
    %546 = vmatpush.msra.mxu0 %v507
    %547 = vmatpush.msra.mxu0 %v506
    %548 = vmatpush.msra.mxu0 %v505
    %549 = vmatpush.msra.mxu0 %v504
    %550 = vmatpush.msra.mxu0 %v503
    %551 = vmatmul.f32.gmra.mxu0 %v466
    %v552 = vpop.f32.mrf.mxu0
    %v553 = vadd.f32 0.0, %v552
    %554 = vmatmul.f32.gmra.mxu0 %v467
    %v555 = vpop.f32.mrf.mxu0
    %v556 = vadd.f32 0.0, %v555
    %557 = vmatmul.f32.gmra.mxu0 %v468
    %v558 = vpop.f32.mrf.mxu0
    %v559 = vadd.f32 0.0, %v558
    %560 = vmatmul.f32.gmra.mxu0 %v469
    %v561 = vpop.f32.mrf.mxu0
    %v562 = vadd.f32 0.0, %v561
    %563 = vmatmul.f32.gmra.mxu0 %v470
    %v564 = vpop.f32.mrf.mxu0
    %v565 = vadd.f32 0.0, %v564
    %566 = vmatmul.f32.gmra.mxu0 %v471
    %v567 = vpop.f32.mrf.mxu0
    %v568 = vadd.f32 0.0, %v567
    %569 = vmatmul.f32.gmra.mxu0 %v472
    %v570 = vpop.f32.mrf.mxu0
    %v571 = vadd.f32 0.0, %v570
    %572 = vmatmul.f32.gmra.mxu0 %v473
    %v573 = vpop.f32.mrf.mxu0
    %v574 = vadd.f32 0.0, %v573
    %575 = vmatmul.f32.gmra.mxu0 %v474
    %v576 = vpop.f32.mrf.mxu0
    %v577 = vadd.f32 0.0, %v576
    %578 = vmatmul.f32.gmra.mxu0 %v475
    %v579 = vpop.f32.mrf.mxu0
    %v580 = vadd.f32 0.0, %v579
    %581 = vmatmul.f32.gmra.mxu0 %v476
    %v582 = vpop.f32.mrf.mxu0
    %v583 = vadd.f32 0.0, %v582
    %584 = vmatmul.f32.gmra.mxu0 %v477
    %v585 = vpop.f32.mrf.mxu0
    %v586 = vadd.f32 0.0, %v585
    %587 = vmatmul.f32.gmra.mxu0 %v478
    %v588 = vpop.f32.mrf.mxu0
    %v589 = vadd.f32 0.0, %v588
    %590 = vmatmul.f32.gmra.mxu0 %v479
    %v591 = vpop.f32.mrf.mxu0
    %v592 = vadd.f32 0.0, %v591
    %593 = vmatmul.f32.gmra.mxu0 %v480
    %v594 = vpop.f32.mrf.mxu0
    %v595 = vadd.f32 0.0, %v594
    %596 = vmatmul.f32.gmra.mxu0 %v481
    %v597 = vpop.f32.mrf.mxu0
    %v598 = vadd.f32 0.0, %v597
    %599 = vdwg.mxu0
    %v600 = vstv %s482
    %v601 = vmul.f32 %v600, %v553
    %v602 = vmul.f32 %v600, %v556
    %v603 = vmul.f32 %v600, %v559
    %v604 = vmul.f32 %v600, %v562
    %v605 = vmul.f32 %v600, %v565
    %v606 = vmul.f32 %v600, %v568
    %v607 = vmul.f32 %v600, %v571
    %v608 = vmul.f32 %v600, %v574
    %v609 = vmul.f32 %v600, %v577
    %v610 = vmul.f32 %v600, %v580
    %v611 = vmul.f32 %v600, %v583
    %v612 = vmul.f32 %v600, %v586
    %v613 = vmul.f32 %v600, %v589
    %v614 = vmul.f32 %v600, %v592
    %v615 = vmul.f32 %v600, %v595
    %v616 = vmul.f32 %v600, %v598
    %v617 = vsub.f32 %v601, %v503
    %v618 = vsub.f32 %v602, %v504
    %v619 = vsub.f32 %v603, %v505
    %v620 = vsub.f32 %v604, %v506
    %v621 = vsub.f32 %v605, %v507
    %v622 = vsub.f32 %v606, %v508
    %v623 = vsub.f32 %v607, %v509
    %v624 = vsub.f32 %v608, %v510
    %v625 = vsub.f32 %v609, %v511
    %v626 = vsub.f32 %v610, %v512
    %v627 = vsub.f32 %v611, %v513
    %v628 = vsub.f32 %v612, %v514
    %v629 = vsub.f32 %v613, %v515
    %v630 = vsub.f32 %v614, %v516
    %v631 = vsub.f32 %v615, %v517
    %v632 = vsub.f32 %v616, %v518
    %633 = vst [vmem:[#allocation2 + $0x8] sm:$0xff] %v617
    %634 = vst [vmem:[#allocation2 + $0x20] sm:$0xff] %v618
    %635 = vst [vmem:[#allocation2 + $0x38] sm:$0xff] %v619
    %636 = vst [vmem:[#allocation2 + $0x50] sm:$0xff] %v620
    %637 = vst [vmem:[#allocation2 + $0x68] sm:$0xff] %v621
    %638 = vst [vmem:[#allocation2 + $0x80] sm:$0xff] %v622
    %639 = vst [vmem:[#allocation2 + $0x98] sm:$0xff] %v623
    %640 = vst [vmem:[#allocation2 + $0xb0] sm:$0xff] %v624
    %641 = vst [vmem:[#allocation2 + $0xc8] sm:$0xff] %v625
    %642 = vst [vmem:[#allocation2 + $0xe0] sm:$0xff] %v626
    %643 = vst [vmem:[#allocation2 + $0xf8] sm:$0xff] %v627
    %644 = vst [vmem:[#allocation2 + $0x110] sm:$0xff] %v628
    %645 = vst [vmem:[#allocation2 + $0x128] sm:$0xff] %v629
    %646 = vst [vmem:[#allocation2 + $0x140] sm:$0xff] %v630
    %647 = vst [vmem:[#allocation2 + $0x158] sm:$0xff] %v631
    %648 = vst [vmem:[#allocation2 + $0x170] sm:$0xff] %v632
    %649 = vmatpush.msra.mxu0 %v632
    %650 = vmatpush.msra.mxu0 %v631
    %651 = vmatpush.msra.mxu0 %v630
    %652 = vmatpush.msra.mxu0 %v629
    %653 = vmatpush.msra.mxu0 %v628
    %654 = vmatpush.msra.mxu0 %v627
    %655 = vmatpush.msra.mxu0 %v626
    %656 = vmatpush.msra.mxu0 %v625
    %657 = vmatpush.msra.mxu0 %v624
    %658 = vmatpush.msra.mxu0 %v623
    %659 = vmatpush.msra.mxu0 %v622
    %660 = vmatpush.msra.mxu0 %v621
    %661 = vmatpush.msra.mxu0 %v620
    %662 = vmatpush.msra.mxu0 %v619
    %663 = vmatpush.msra.mxu0 %v618
    %664 = vmatpush.msra.mxu0 %v617
    %665 = vmatmul.f32.gmra.mxu0 %v466
    %v666 = vpop.f32.mrf.mxu0
    %v667 = vadd.f32 0.0, %v666
    %668 = vmatmul.f32.gmra.mxu0 %v467
    %v669 = vpop.f32.mrf.mxu0
    %v670 = vadd.f32 0.0, %v669
    %671 = vmatmul.f32.gmra.mxu0 %v468
    %v672 = vpop.f32.mrf.mxu0
    %v673 = vadd.f32 0.0, %v672
    %674 = vmatmul.f32.gmra.mxu0 %v469
    %v675 = vpop.f32.mrf.mxu0
    %v676 = vadd.f32 0.0, %v675
    %677 = vmatmul.f32.gmra.mxu0 %v470
    %v678 = vpop.f32.mrf.mxu0
    %v679 = vadd.f32 0.0, %v678
    %680 = vmatmul.f32.gmra.mxu0 %v471
    %v681 = vpop.f32.mrf.mxu0
    %v682 = vadd.f32 0.0, %v681
    %683 = vmatmul.f32.gmra.mxu0 %v472
    %v684 = vpop.f32.mrf.mxu0
    %v685 = vadd.f32 0.0, %v684
    %686 = vmatmul.f32.gmra.mxu0 %v473
    %v687 = vpop.f32.mrf.mxu0
    %v688 = vadd.f32 0.0, %v687
    %689 = vmatmul.f32.gmra.mxu0 %v474
    %v690 = vpop.f32.mrf.mxu0
    %v691 = vadd.f32 0.0, %v690
    %692 = vmatmul.f32.gmra.mxu0 %v475
    %v693 = vpop.f32.mrf.mxu0
    %v694 = vadd.f32 0.0, %v693
    %695 = vmatmul.f32.gmra.mxu0 %v476
    %v696 = vpop.f32.mrf.mxu0
    %v697 = vadd.f32 0.0, %v696
    %698 = vmatmul.f32.gmra.mxu0 %v477
    %v699 = vpop.f32.mrf.mxu0
    %v700 = vadd.f32 0.0, %v699
    %701 = vmatmul.f32.gmra.mxu0 %v478
    %v702 = vpop.f32.mrf.mxu0
    %v703 = vadd.f32 0.0, %v702
    %704 = vmatmul.f32.gmra.mxu0 %v479
    %v705 = vpop.f32.mrf.mxu0
    %v706 = vadd.f32 0.0, %v705
    %707 = vmatmul.f32.gmra.mxu0 %v480
    %v708 = vpop.f32.mrf.mxu0
    %v709 = vadd.f32 0.0, %v708
    %710 = vmatmul.f32.gmra.mxu0 %v481
    %v711 = vpop.f32.mrf.mxu0
    %v712 = vadd.f32 0.0, %v711
    %713 = vdwg.mxu0
    %s714 = smul.f32 %s482, 2.0
    %v715 = vstv %s714
    %v716 = vmul.f32 %v715, %v667
    %v717 = vmul.f32 %v715, %v670
    %v718 = vmul.f32 %v715, %v673
    %v719 = vmul.f32 %v715, %v676
    %v720 = vmul.f32 %v715, %v679
    %v721 = vmul.f32 %v715, %v682
    %v722 = vmul.f32 %v715, %v685
    %v723 = vmul.f32 %v715, %v688
    %v724 = vmul.f32 %v715, %v691
    %v725 = vmul.f32 %v715, %v694
    %v726 = vmul.f32 %v715, %v697
    %v727 = vmul.f32 %v715, %v700
    %v728 = vmul.f32 %v715, %v703
    %v729 = vmul.f32 %v715, %v706
    %v730 = vmul.f32 %v715, %v709
    %v731 = vmul.f32 %v715, %v712
    %v732 = vmul.f32 %v617, 2.0
    %v733 = vmul.f32 %v618, 2.0
    %v734 = vmul.f32 %v619, 2.0
    %v735 = vmul.f32 %v620, 2.0
    %v736 = vmul.f32 %v621, 2.0
    %v737 = vmul.f32 %v622, 2.0
    %v738 = vmul.f32 %v623, 2.0
    %v739 = vmul.f32 %v624, 2.0
    %v740 = vmul.f32 %v625, 2.0
    %v741 = vmul.f32 %v626, 2.0
    %v742 = vmul.f32 %v627, 2.0
    %v743 = vmul.f32 %v628, 2.0
    %v744 = vmul.f32 %v629, 2.0
    %v745 = vmul.f32 %v630, 2.0
    %v746 = vmul.f32 %v631, 2.0
    %v747 = vmul.f32 %v632, 2.0
    %v748 = vsub.f32 %v716, %v732
    %v749 = vsub.f32 %v717, %v733
    %v750 = vsub.f32 %v718, %v734
    %v751 = vsub.f32 %v719, %v735
    %v752 = vsub.f32 %v720, %v736
    %v753 = vsub.f32 %v721, %v737
    %v754 = vsub.f32 %v722, %v738
    %v755 = vsub.f32 %v723, %v739
    %v756 = vsub.f32 %v724, %v740
    %v757 = vsub.f32 %v725, %v741
    %v758 = vsub.f32 %v726, %v742
    %v759 = vsub.f32 %v727, %v743
    %v760 = vsub.f32 %v728, %v744
    %v761 = vsub.f32 %v729, %v745
    %v762 = vsub.f32 %v730, %v746
    %v763 = vsub.f32 %v731, %v747
    %v764 = vsub.f32 %v748, %v503
    %v765 = vsub.f32 %v749, %v504
    %v766 = vsub.f32 %v750, %v505
    %v767 = vsub.f32 %v751, %v506
    %v768 = vsub.f32 %v752, %v507
    %v769 = vsub.f32 %v753, %v508
    %v770 = vsub.f32 %v754, %v509
    %v771 = vsub.f32 %v755, %v510
    %v772 = vsub.f32 %v756, %v511
    %v773 = vsub.f32 %v757, %v512
    %v774 = vsub.f32 %v758, %v513
    %v775 = vsub.f32 %v759, %v514
    %v776 = vsub.f32 %v760, %v515
    %v777 = vsub.f32 %v761, %v516
    %v778 = vsub.f32 %v762, %v517
    %v779 = vsub.f32 %v763, %v518
    %780 = vst [vmem:[#allocation2 + $0x10] sm:$0xff] %v764
    %781 = vst [vmem:[#allocation2 + $0x28] sm:$0xff] %v765
    %782 = vst [vmem:[#allocation2 + $0x40] sm:$0xff] %v766
    %783 = vst [vmem:[#allocation2 + $0x58] sm:$0xff] %v767
    %784 = vst [vmem:[#allocation2 + $0x70] sm:$0xff] %v768
    %785 = vst [vmem:[#allocation2 + $0x88] sm:$0xff] %v769
    %786 = vst [vmem:[#allocation2 + $0xa0] sm:$0xff] %v770
    %787 = vst [vmem:[#allocation2 + $0xb8] sm:$0xff] %v771
    %788 = vst [vmem:[#allocation2 + $0xd0] sm:$0xff] %v772
    %789 = vst [vmem:[#allocation2 + $0xe8] sm:$0xff] %v773
    %790 = vst [vmem:[#allocation2 + $0x100] sm:$0xff] %v774
    %791 = vst [vmem:[#allocation2 + $0x118] sm:$0xff] %v775
    %792 = vst [vmem:[#allocation2 + $0x130] sm:$0xff] %v776
    %793 = vst [vmem:[#allocation2 + $0x148] sm:$0xff] %v777
    %794 = vst [vmem:[#allocation2 + $0x160] sm:$0xff] %v778
    %795 = vst [vmem:[#allocation2 + $0x178] sm:$0xff] %v779
    %v796 = vld [vmem:[#allocation2] sm:$0xff]
    %v797 = vld [vmem:[#allocation2 + $0x8] sm:$0xff]
    %v798 = vld [vmem:[#allocation2 + $0x10] sm:$0xff]
    %v799 = vld [vmem:[#allocation2 + $0x18] sm:$0xff]
    %v800 = vld [vmem:[#allocation2 + $0x20] sm:$0xff]
    %v801 = vld [vmem:[#allocation2 + $0x28] sm:$0xff]
    %v802 = vld [vmem:[#allocation2 + $0x30] sm:$0xff]
    %v803 = vld [vmem:[#allocation2 + $0x38] sm:$0xff]
    %v804 = vld [vmem:[#allocation2 + $0x40] sm:$0xff]
    %v805 = vld [vmem:[#allocation2 + $0x48] sm:$0xff]
    %v806 = vld [vmem:[#allocation2 + $0x50] sm:$0xff]
    %v807 = vld [vmem:[#allocation2 + $0x58] sm:$0xff]
    %v808 = vld [vmem:[#allocation2 + $0x60] sm:$0xff]
    %v809 = vld [vmem:[#allocation2 + $0x68] sm:$0xff]
    %v810 = vld [vmem:[#allocation2 + $0x70] sm:$0xff]
    %v811 = vld [vmem:[#allocation2 + $0x78] sm:$0xff]
    %v812 = vld [vmem:[#allocation2 + $0x80] sm:$0xff]
    %v813 = vld [vmem:[#allocation2 + $0x88] sm:$0xff]
    %v814 = vld [vmem:[#allocation2 + $0x90] sm:$0xff]
    %v815 = vld [vmem:[#allocation2 + $0x98] sm:$0xff]
    %v816 = vld [vmem:[#allocation2 + $0xa0] sm:$0xff]
    %v817 = vld [vmem:[#allocation2 + $0xa8] sm:$0xff]
    %v818 = vld [vmem:[#allocation2 + $0xb0] sm:$0xff]
    %v819 = vld [vmem:[#allocation2 + $0xb8] sm:$0xff]
    %v820 = vld [vmem:[#allocation2 + $0xc0] sm:$0xff]
    %v821 = vld [vmem:[#allocation2 + $0xc8] sm:$0xff]
    %v822 = vld [vmem:[#allocation2 + $0xd0] sm:$0xff]
    %v823 = vld [vmem:[#allocation2 + $0xd8] sm:$0xff]
    %v824 = vld [vmem:[#allocation2 + $0xe0] sm:$0xff]
    %v825 = vld [vmem:[#allocation2 + $0xe8] sm:$0xff]
    %v826 = vld [vmem:[#allocation2 + $0xf0] sm:$0xff]
    %v827 = vld [vmem:[#allocation2 + $0xf8] sm:$0xff]
    %v828 = vld [vmem:[#allocation2 + $0x100] sm:$0xff]
    %v829 = vld [vmem:[#allocation2 + $0x108] sm:$0xff]
    %v830 = vld [vmem:[#allocation2 + $0x110] sm:$0xff]
    %v831 = vld [vmem:[#allocation2 + $0x118] sm:$0xff]
    %v832 = vld [vmem:[#allocation2 + $0x120] sm:$0xff]
    %v833 = vld [vmem:[#allocation2 + $0x128] sm:$0xff]
    %v834 = vld [vmem:[#allocation2 + $0x130] sm:$0xff]
    %v835 = vld [vmem:[#allocation2 + $0x138] sm:$0xff]
    %v836 = vld [vmem:[#allocation2 + $0x140] sm:$0xff]
    %v837 = vld [vmem:[#allocation2 + $0x148] sm:$0xff]
    %v838 = vld [vmem:[#allocation2 + $0x150] sm:$0xff]
    %v839 = vld [vmem:[#allocation2 + $0x158] sm:$0xff]
    %v840 = vld [vmem:[#allocation2 + $0x160] sm:$0xff]
    %v841 = vld [vmem:[#allocation2 + $0x168] sm:$0xff]
    %v842 = vld [vmem:[#allocation2 + $0x170] sm:$0xff]
    %v843 = vld [vmem:[#allocation2 + $0x178] sm:$0xff]
    %v844 = vld [vmem:[#allocation10] sm:$0xff]
    %v845 = vld [vmem:[#allocation10 + $0x8] sm:$0xff]
    %v846 = vld [vmem:[#allocation10 + $0x10] sm:$0xff]
    %v847 = vld [vmem:[#allocation10 + $0x18] sm:$0xff]
    %v848 = vld [vmem:[#allocation10 + $0x20] sm:$0xff]
    %v849 = vld [vmem:[#allocation10 + $0x28] sm:$0xff]
    %v850 = vld [vmem:[#allocation10 + $0x30] sm:$0xff]
    %v851 = vld [vmem:[#allocation10 + $0x38] sm:$0xff]
    %v852 = vld [vmem:[#allocation10 + $0x40] sm:$0xff]
    %v853 = vld [vmem:[#allocation10 + $0x48] sm:$0xff]
    %v854 = vld [vmem:[#allocation10 + $0x50] sm:$0xff]
    %v855 = vld [vmem:[#allocation10 + $0x58] sm:$0xff]
    %v856 = vld [vmem:[#allocation10 + $0x60] sm:$0xff]
    %v857 = vld [vmem:[#allocation10 + $0x68] sm:$0xff]
    %v858 = vld [vmem:[#allocation10 + $0x70] sm:$0xff]
    %v859 = vld [vmem:[#allocation10 + $0x78] sm:$0xff]
    %v860 = vld [vmem:[#allocation10 + $0x80] sm:$0xff]
    %v861 = vld [vmem:[#allocation10 + $0x88] sm:$0xff]
    %v862 = vld [vmem:[#allocation10 + $0x90] sm:$0xff]
    %v863 = vld [vmem:[#allocation10 + $0x98] sm:$0xff]
    %v864 = vld [vmem:[#allocation10 + $0xa0] sm:$0xff]
    %v865 = vld [vmem:[#allocation10 + $0xa8] sm:$0xff]
    %v866 = vld [vmem:[#allocation10 + $0xb0] sm:$0xff]
    %v867 = vld [vmem:[#allocation10 + $0xb8] sm:$0xff]
    %v868 = vld [vmem:[#allocation10 + $0xc0] sm:$0xff]
    %v869 = vld [vmem:[#allocation10 + $0xc8] sm:$0xff]
    %v870 = vld [vmem:[#allocation10 + $0xd0] sm:$0xff]
    %v871 = vld [vmem:[#allocation10 + $0xd8] sm:$0xff]
    %v872 = vld [vmem:[#allocation10 + $0xe0] sm:$0xff]
    %v873 = vld [vmem:[#allocation10 + $0xe8] sm:$0xff]
    %v874 = vld [vmem:[#allocation10 + $0xf0] sm:$0xff]
    %v875 = vld [vmem:[#allocation10 + $0xf8] sm:$0xff]
    %v876 = vld [vmem:[#allocation10 + $0x100] sm:$0xff]
    %v877 = vld [vmem:[#allocation10 + $0x108] sm:$0xff]
    %v878 = vld [vmem:[#allocation10 + $0x110] sm:$0xff]
    %v879 = vld [vmem:[#allocation10 + $0x118] sm:$0xff]
    %v880 = vld [vmem:[#allocation10 + $0x120] sm:$0xff]
    %v881 = vld [vmem:[#allocation10 + $0x128] sm:$0xff]
    %v882 = vld [vmem:[#allocation10 + $0x130] sm:$0xff]
    %v883 = vld [vmem:[#allocation10 + $0x138] sm:$0xff]
    %v884 = vld [vmem:[#allocation10 + $0x140] sm:$0xff]
    %v885 = vld [vmem:[#allocation10 + $0x148] sm:$0xff]
    %v886 = vld [vmem:[#allocation10 + $0x150] sm:$0xff]
    %v887 = vld [vmem:[#allocation10 + $0x158] sm:$0xff]
    %v888 = vld [vmem:[#allocation10 + $0x160] sm:$0xff]
    %v889 = vld [vmem:[#allocation10 + $0x168] sm:$0xff]
    %v890 = vld [vmem:[#allocation10 + $0x170] sm:$0xff]
    %v891 = vld [vmem:[#allocation10 + $0x178] sm:$0xff]
    %v892 = vld [vmem:[%s4] sm:$0x1]
    %v894 = vperm.slane %v892, 0
    %896 = vmatpush.msra.mxu0 %v859
    %897 = vmatpush.msra.mxu0 %v858
    %898 = vmatpush.msra.mxu0 %v857
    %899 = vmatpush.msra.mxu0 %v856
    %900 = vmatpush.msra.mxu0 %v855
    %901 = vmatpush.msra.mxu0 %v854
    %902 = vmatpush.msra.mxu0 %v853
    %903 = vmatpush.msra.mxu0 %v852
    %904 = vmatpush.msra.mxu0 %v851
    %905 = vmatpush.msra.mxu0 %v850
    %906 = vmatpush.msra.mxu0 %v849
    %907 = vmatpush.msra.mxu0 %v848
    %908 = vmatpush.msra.mxu0 %v847
    %909 = vmatpush.msra.mxu0 %v846
    %910 = vmatpush.msra.mxu0 %v845
    %911 = vmatpush.msra.mxu0 %v844
    %912 = vmatmul.f32.gmra.mxu0 %v796
    %v913 = vpop.f32.mrf.mxu0
    %v914 = vadd.f32 %v894, %v913
    %915 = vmatmul.f32.gmra.mxu0 %v799
    %v916 = vpop.f32.mrf.mxu0
    %v917 = vadd.f32 %v894, %v916
    %918 = vmatmul.f32.gmra.mxu0 %v802
    %v919 = vpop.f32.mrf.mxu0
    %v920 = vadd.f32 %v894, %v919
    %921 = vmatmul.f32.gmra.mxu0 %v805
    %v922 = vpop.f32.mrf.mxu0
    %v923 = vadd.f32 %v894, %v922
    %924 = vmatmul.f32.gmra.mxu0 %v808
    %v925 = vpop.f32.mrf.mxu0
    %v926 = vadd.f32 %v894, %v925
    %927 = vmatmul.f32.gmra.mxu0 %v811
    %v928 = vpop.f32.mrf.mxu0
    %v929 = vadd.f32 %v894, %v928
    %930 = vmatmul.f32.gmra.mxu0 %v814
    %v931 = vpop.f32.mrf.mxu0
    %v932 = vadd.f32 %v894, %v931
    %933 = vmatmul.f32.gmra.mxu0 %v817
    %v934 = vpop.f32.mrf.mxu0
    %v935 = vadd.f32 %v894, %v934
    %936 = vmatmul.f32.gmra.mxu0 %v820
    %v937 = vpop.f32.mrf.mxu0
    %v938 = vadd.f32 %v894, %v937
    %939 = vmatmul.f32.gmra.mxu0 %v823
    %v940 = vpop.f32.mrf.mxu0
    %v941 = vadd.f32 %v894, %v940
    %942 = vmatmul.f32.gmra.mxu0 %v826
    %v943 = vpop.f32.mrf.mxu0
    %v944 = vadd.f32 %v894, %v943
    %945 = vmatmul.f32.gmra.mxu0 %v829
    %v946 = vpop.f32.mrf.mxu0
    %v947 = vadd.f32 %v894, %v946
    %948 = vmatmul.f32.gmra.mxu0 %v832
    %v949 = vpop.f32.mrf.mxu0
    %v950 = vadd.f32 %v894, %v949
    %951 = vmatmul.f32.gmra.mxu0 %v835
    %v952 = vpop.f32.mrf.mxu0
    %v953 = vadd.f32 %v894, %v952
    %954 = vmatmul.f32.gmra.mxu0 %v838
    %v955 = vpop.f32.mrf.mxu0
    %v956 = vadd.f32 %v894, %v955
    %957 = vmatmul.f32.gmra.mxu0 %v841
    %v958 = vpop.f32.mrf.mxu0
    %v959 = vadd.f32 %v894, %v958
    %960 = vdwg.mxu0
    %961 = vmatpush.msra.mxu0 %v875
    %962 = vmatpush.msra.mxu0 %v874
    %963 = vmatpush.msra.mxu0 %v873
    %964 = vmatpush.msra.mxu0 %v872
    %965 = vmatpush.msra.mxu0 %v871
    %966 = vmatpush.msra.mxu0 %v870
    %967 = vmatpush.msra.mxu0 %v869
    %968 = vmatpush.msra.mxu0 %v868
    %969 = vmatpush.msra.mxu0 %v867
    %970 = vmatpush.msra.mxu0 %v866
    %971 = vmatpush.msra.mxu0 %v865
    %972 = vmatpush.msra.mxu0 %v864
    %973 = vmatpush.msra.mxu0 %v863
    %974 = vmatpush.msra.mxu0 %v862
    %975 = vmatpush.msra.mxu0 %v861
    %976 = vmatpush.msra.mxu0 %v860
    %977 = vmatmul.f32.gmra.mxu0 %v797
    %v978 = vpop.f32.mrf.mxu0
    %v979 = vadd.f32 %v914, %v978
    %980 = vmatmul.f32.gmra.mxu0 %v800
    %v981 = vpop.f32.mrf.mxu0
    %v982 = vadd.f32 %v917, %v981
    %983 = vmatmul.f32.gmra.mxu0 %v803
    %v984 = vpop.f32.mrf.mxu0
    %v985 = vadd.f32 %v920, %v984
    %986 = vmatmul.f32.gmra.mxu0 %v806
    %v987 = vpop.f32.mrf.mxu0
    %v988 = vadd.f32 %v923, %v987
    %989 = vmatmul.f32.gmra.mxu0 %v809
    %v990 = vpop.f32.mrf.mxu0
    %v991 = vadd.f32 %v926, %v990
    %992 = vmatmul.f32.gmra.mxu0 %v812
    %v993 = vpop.f32.mrf.mxu0
    %v994 = vadd.f32 %v929, %v993
    %995 = vmatmul.f32.gmra.mxu0 %v815
    %v996 = vpop.f32.mrf.mxu0
    %v997 = vadd.f32 %v932, %v996
    %998 = vmatmul.f32.gmra.mxu0 %v818
    %v999 = vpop.f32.mrf.mxu0
    %v1000 = vadd.f32 %v935, %v999
    %1001 = vmatmul.f32.gmra.mxu0 %v821
    %v1002 = vpop.f32.mrf.mxu0
    %v1003 = vadd.f32 %v938, %v1002
    %1004 = vmatmul.f32.gmra.mxu0 %v824
    %v1005 = vpop.f32.mrf.mxu0
    %v1006 = vadd.f32 %v941, %v1005
    %1007 = vmatmul.f32.gmra.mxu0 %v827
    %v1008 = vpop.f32.mrf.mxu0
    %v1009 = vadd.f32 %v944, %v1008
    %1010 = vmatmul.f32.gmra.mxu0 %v830
    %v1011 = vpop.f32.mrf.mxu0
    %v1012 = vadd.f32 %v947, %v1011
    %1013 = vmatmul.f32.gmra.mxu0 %v833
    %v1014 = vpop.f32.mrf.mxu0
    %v1015 = vadd.f32 %v950, %v1014
    %1016 = vmatmul.f32.gmra.mxu0 %v836
    %v1017 = vpop.f32.mrf.mxu0
    %v1018 = vadd.f32 %v953, %v1017
    %1019 = vmatmul.f32.gmra.mxu0 %v839
    %v1020 = vpop.f32.mrf.mxu0
    %v1021 = vadd.f32 %v956, %v1020
    %1022 = vmatmul.f32.gmra.mxu0 %v842
    %v1023 = vpop.f32.mrf.mxu0
    %v1024 = vadd.f32 %v959, %v1023
    %1025 = vdwg.mxu0
    %1026 = vmatpush.msra.mxu0 %v891
    %1027 = vmatpush.msra.mxu0 %v890
    %1028 = vmatpush.msra.mxu0 %v889
    %1029 = vmatpush.msra.mxu0 %v888
    %1030 = vmatpush.msra.mxu0 %v887
    %1031 = vmatpush.msra.mxu0 %v886
    %1032 = vmatpush.msra.mxu0 %v885
    %1033 = vmatpush.msra.mxu0 %v884
    %1034 = vmatpush.msra.mxu0 %v883
    %1035 = vmatpush.msra.mxu0 %v882
    %1036 = vmatpush.msra.mxu0 %v881
    %1037 = vmatpush.msra.mxu0 %v880
    %1038 = vmatpush.msra.mxu0 %v879
    %1039 = vmatpush.msra.mxu0 %v878
    %1040 = vmatpush.msra.mxu0 %v877
    %1041 = vmatpush.msra.mxu0 %v876
    %1042 = vmatmul.f32.gmra.mxu0 %v798
    %v1043 = vpop.f32.mrf.mxu0
    %v1044 = vadd.f32 %v979, %v1043
    %1045 = vmatmul.f32.gmra.mxu0 %v801
    %v1046 = vpop.f32.mrf.mxu0
    %v1047 = vadd.f32 %v982, %v1046
    %1048 = vmatmul.f32.gmra.mxu0 %v804
    %v1049 = vpop.f32.mrf.mxu0
    %v1050 = vadd.f32 %v985, %v1049
    %1051 = vmatmul.f32.gmra.mxu0 %v807
    %v1052 = vpop.f32.mrf.mxu0
    %v1053 = vadd.f32 %v988, %v1052
    %1054 = vmatmul.f32.gmra.mxu0 %v810
    %v1055 = vpop.f32.mrf.mxu0
    %v1056 = vadd.f32 %v991, %v1055
    %1057 = vmatmul.f32.gmra.mxu0 %v813
    %v1058 = vpop.f32.mrf.mxu0
    %v1059 = vadd.f32 %v994, %v1058
    %1060 = vmatmul.f32.gmra.mxu0 %v816
    %v1061 = vpop.f32.mrf.mxu0
    %v1062 = vadd.f32 %v997, %v1061
    %1063 = vmatmul.f32.gmra.mxu0 %v819
    %v1064 = vpop.f32.mrf.mxu0
    %v1065 = vadd.f32 %v1000, %v1064
    %1066 = vmatmul.f32.gmra.mxu0 %v822
    %v1067 = vpop.f32.mrf.mxu0
    %v1068 = vadd.f32 %v1003, %v1067
    %1069 = vmatmul.f32.gmra.mxu0 %v825
    %v1070 = vpop.f32.mrf.mxu0
    %v1071 = vadd.f32 %v1006, %v1070
    %1072 = vmatmul.f32.gmra.mxu0 %v828
    %v1073 = vpop.f32.mrf.mxu0
    %v1074 = vadd.f32 %v1009, %v1073
    %1075 = vmatmul.f32.gmra.mxu0 %v831
    %v1076 = vpop.f32.mrf.mxu0
    %v1077 = vadd.f32 %v1012, %v1076
    %1078 = vmatmul.f32.gmra.mxu0 %v834
    %v1079 = vpop.f32.mrf.mxu0
    %v1080 = vadd.f32 %v1015, %v1079
    %1081 = vmatmul.f32.gmra.mxu0 %v837
    %v1082 = vpop.f32.mrf.mxu0
    %v1083 = vadd.f32 %v1018, %v1082
    %1084 = vmatmul.f32.gmra.mxu0 %v840
    %v1085 = vpop.f32.mrf.mxu0
    %v1086 = vadd.f32 %v1021, %v1085
    %1087 = vmatmul.f32.gmra.mxu0 %v843
    %v1088 = vpop.f32.mrf.mxu0
    %v1089 = vadd.f32 %v1024, %v1088
    %1090 = vdwg.mxu0
    %v1091 = vmax.f32 %v1044, 0.0
    %v1092 = vmax.f32 %v1047, 0.0
    %v1093 = vmax.f32 %v1050, 0.0
    %v1094 = vmax.f32 %v1053, 0.0
    %v1095 = vmax.f32 %v1056, 0.0
    %v1096 = vmax.f32 %v1059, 0.0
    %v1097 = vmax.f32 %v1062, 0.0
    %v1098 = vmax.f32 %v1065, 0.0
    %v1099 = vmax.f32 %v1068, 0.0
    %v1100 = vmax.f32 %v1071, 0.0
    %v1101 = vmax.f32 %v1074, 0.0
    %v1102 = vmax.f32 %v1077, 0.0
    %v1103 = vmax.f32 %v1080, 0.0
    %v1104 = vmax.f32 %v1083, 0.0
    %v1105 = vmax.f32 %v1086, 0.0
    %v1106 = vmax.f32 %v1089, 0.0
    %1107 = vst [vmem:[#allocation3] sm:$0xff] %v1091
    %1108 = vst [vmem:[#allocation3 + $0x18] sm:$0xff] %v1092
    %1109 = vst [vmem:[#allocation3 + $0x30] sm:$0xff] %v1093
    %1110 = vst [vmem:[#allocation3 + $0x48] sm:$0xff] %v1094
    %1111 = vst [vmem:[#allocation3 + $0x60] sm:$0xff] %v1095
    %1112 = vst [vmem:[#allocation3 + $0x78] sm:$0xff] %v1096
    %1113 = vst [vmem:[#allocation3 + $0x90] sm:$0xff] %v1097
    %1114 = vst [vmem:[#allocation3 + $0xa8] sm:$0xff] %v1098
    %1115 = vst [vmem:[#allocation3 + $0xc0] sm:$0xff] %v1099
    %1116 = vst [vmem:[#allocation3 + $0xd8] sm:$0xff] %v1100
    %1117 = vst [vmem:[#allocation3 + $0xf0] sm:$0xff] %v1101
    %1118 = vst [vmem:[#allocation3 + $0x108] sm:$0xff] %v1102
    %1119 = vst [vmem:[#allocation3 + $0x120] sm:$0xff] %v1103
    %1120 = vst [vmem:[#allocation3 + $0x138] sm:$0xff] %v1104
    %1121 = vst [vmem:[#allocation3 + $0x150] sm:$0xff] %v1105
    %1122 = vst [vmem:[#allocation3 + $0x168] sm:$0xff] %v1106
    %1123 = vmatpush.msra.mxu0 %v1106
    %1124 = vmatpush.msra.mxu0 %v1105
    %1125 = vmatpush.msra.mxu0 %v1104
    %1126 = vmatpush.msra.mxu0 %v1103
    %1127 = vmatpush.msra.mxu0 %v1102
    %1128 = vmatpush.msra.mxu0 %v1101
    %1129 = vmatpush.msra.mxu0 %v1100
    %1130 = vmatpush.msra.mxu0 %v1099
    %1131 = vmatpush.msra.mxu0 %v1098
    %1132 = vmatpush.msra.mxu0 %v1097
    %1133 = vmatpush.msra.mxu0 %v1096
    %1134 = vmatpush.msra.mxu0 %v1095
    %1135 = vmatpush.msra.mxu0 %v1094
    %1136 = vmatpush.msra.mxu0 %v1093
    %1137 = vmatpush.msra.mxu0 %v1092
    %1138 = vmatpush.msra.mxu0 %v1091
    %1139 = vmatmul.f32.gmra.mxu0 %v466
    %v1140 = vpop.f32.mrf.mxu0
    %v1141 = vadd.f32 0.0, %v1140
    %1142 = vmatmul.f32.gmra.mxu0 %v467
    %v1143 = vpop.f32.mrf.mxu0
    %v1144 = vadd.f32 0.0, %v1143
    %1145 = vmatmul.f32.gmra.mxu0 %v468
    %v1146 = vpop.f32.mrf.mxu0
    %v1147 = vadd.f32 0.0, %v1146
    %1148 = vmatmul.f32.gmra.mxu0 %v469
    %v1149 = vpop.f32.mrf.mxu0
    %v1150 = vadd.f32 0.0, %v1149
    %1151 = vmatmul.f32.gmra.mxu0 %v470
    %v1152 = vpop.f32.mrf.mxu0
    %v1153 = vadd.f32 0.0, %v1152
    %1154 = vmatmul.f32.gmra.mxu0 %v471
    %v1155 = vpop.f32.mrf.mxu0
    %v1156 = vadd.f32 0.0, %v1155
    %1157 = vmatmul.f32.gmra.mxu0 %v472
    %v1158 = vpop.f32.mrf.mxu0
    %v1159 = vadd.f32 0.0, %v1158
    %1160 = vmatmul.f32.gmra.mxu0 %v473
    %v1161 = vpop.f32.mrf.mxu0
    %v1162 = vadd.f32 0.0, %v1161
    %1163 = vmatmul.f32.gmra.mxu0 %v474
    %v1164 = vpop.f32.mrf.mxu0
    %v1165 = vadd.f32 0.0, %v1164
    %1166 = vmatmul.f32.gmra.mxu0 %v475
    %v1167 = vpop.f32.mrf.mxu0
    %v1168 = vadd.f32 0.0, %v1167
    %1169 = vmatmul.f32.gmra.mxu0 %v476
    %v1170 = vpop.f32.mrf.mxu0
    %v1171 = vadd.f32 0.0, %v1170
    %1172 = vmatmul.f32.gmra.mxu0 %v477
    %v1173 = vpop.f32.mrf.mxu0
    %v1174 = vadd.f32 0.0, %v1173
    %1175 = vmatmul.f32.gmra.mxu0 %v478
    %v1176 = vpop.f32.mrf.mxu0
    %v1177 = vadd.f32 0.0, %v1176
    %1178 = vmatmul.f32.gmra.mxu0 %v479
    %v1179 = vpop.f32.mrf.mxu0
    %v1180 = vadd.f32 0.0, %v1179
    %1181 = vmatmul.f32.gmra.mxu0 %v480
    %v1182 = vpop.f32.mrf.mxu0
    %v1183 = vadd.f32 0.0, %v1182
    %1184 = vmatmul.f32.gmra.mxu0 %v481
    %v1185 = vpop.f32.mrf.mxu0
    %v1186 = vadd.f32 0.0, %v1185
    %1187 = vdwg.mxu0
    %v1188 = vmul.f32 %v600, %v1141
    %v1189 = vmul.f32 %v600, %v1144
    %v1190 = vmul.f32 %v600, %v1147
    %v1191 = vmul.f32 %v600, %v1150
    %v1192 = vmul.f32 %v600, %v1153
    %v1193 = vmul.f32 %v600, %v1156
    %v1194 = vmul.f32 %v600, %v1159
    %v1195 = vmul.f32 %v600, %v1162
    %v1196 = vmul.f32 %v600, %v1165
    %v1197 = vmul.f32 %v600, %v1168
    %v1198 = vmul.f32 %v600, %v1171
    %v1199 = vmul.f32 %v600, %v1174
    %v1200 = vmul.f32 %v600, %v1177
    %v1201 = vmul.f32 %v600, %v1180
    %v1202 = vmul.f32 %v600, %v1183
    %v1203 = vmul.f32 %v600, %v1186
    %v1204 = vsub.f32 %v1188, %v1091
    %v1205 = vsub.f32 %v1189, %v1092
    %v1206 = vsub.f32 %v1190, %v1093
    %v1207 = vsub.f32 %v1191, %v1094
    %v1208 = vsub.f32 %v1192, %v1095
    %v1209 = vsub.f32 %v1193, %v1096
    %v1210 = vsub.f32 %v1194, %v1097
    %v1211 = vsub.f32 %v1195, %v1098
    %v1212 = vsub.f32 %v1196, %v1099
    %v1213 = vsub.f32 %v1197, %v1100
    %v1214 = vsub.f32 %v1198, %v1101
    %v1215 = vsub.f32 %v1199, %v1102
    %v1216 = vsub.f32 %v1200, %v1103
    %v1217 = vsub.f32 %v1201, %v1104
    %v1218 = vsub.f32 %v1202, %v1105
    %v1219 = vsub.f32 %v1203, %v1106
    %1220 = vst [vmem:[#allocation3 + $0x8] sm:$0xff] %v1204
    %1221 = vst [vmem:[#allocation3 + $0x20] sm:$0xff] %v1205
    %1222 = vst [vmem:[#allocation3 + $0x38] sm:$0xff] %v1206
    %1223 = vst [vmem:[#allocation3 + $0x50] sm:$0xff] %v1207
    %1224 = vst [vmem:[#allocation3 + $0x68] sm:$0xff] %v1208
    %1225 = vst [vmem:[#allocation3 + $0x80] sm:$0xff] %v1209
    %1226 = vst [vmem:[#allocation3 + $0x98] sm:$0xff] %v1210
    %1227 = vst [vmem:[#allocation3 + $0xb0] sm:$0xff] %v1211
    %1228 = vst [vmem:[#allocation3 + $0xc8] sm:$0xff] %v1212
    %1229 = vst [vmem:[#allocation3 + $0xe0] sm:$0xff] %v1213
    %1230 = vst [vmem:[#allocation3 + $0xf8] sm:$0xff] %v1214
    %1231 = vst [vmem:[#allocation3 + $0x110] sm:$0xff] %v1215
    %1232 = vst [vmem:[#allocation3 + $0x128] sm:$0xff] %v1216
    %1233 = vst [vmem:[#allocation3 + $0x140] sm:$0xff] %v1217
    %1234 = vst [vmem:[#allocation3 + $0x158] sm:$0xff] %v1218
    %1235 = vst [vmem:[#allocation3 + $0x170] sm:$0xff] %v1219
    %1236 = vmatpush.msra.mxu0 %v1219
    %1237 = vmatpush.msra.mxu0 %v1218
    %1238 = vmatpush.msra.mxu0 %v1217
    %1239 = vmatpush.msra.mxu0 %v1216
    %1240 = vmatpush.msra.mxu0 %v1215
    %1241 = vmatpush.msra.mxu0 %v1214
    %1242 = vmatpush.msra.mxu0 %v1213
    %1243 = vmatpush.msra.mxu0 %v1212
    %1244 = vmatpush.msra.mxu0 %v1211
    %1245 = vmatpush.msra.mxu0 %v1210
    %1246 = vmatpush.msra.mxu0 %v1209
    %1247 = vmatpush.msra.mxu0 %v1208
    %1248 = vmatpush.msra.mxu0 %v1207
    %1249 = vmatpush.msra.mxu0 %v1206
    %1250 = vmatpush.msra.mxu0 %v1205
    %1251 = vmatpush.msra.mxu0 %v1204
    %1252 = vmatmul.f32.gmra.mxu0 %v466
    %v1253 = vpop.f32.mrf.mxu0
    %v1254 = vadd.f32 0.0, %v1253
    %1255 = vmatmul.f32.gmra.mxu0 %v467
    %v1256 = vpop.f32.mrf.mxu0
    %v1257 = vadd.f32 0.0, %v1256
    %1258 = vmatmul.f32.gmra.mxu0 %v468
    %v1259 = vpop.f32.mrf.mxu0
    %v1260 = vadd.f32 0.0, %v1259
    %1261 = vmatmul.f32.gmra.mxu0 %v469
    %v1262 = vpop.f32.mrf.mxu0
    %v1263 = vadd.f32 0.0, %v1262
    %1264 = vmatmul.f32.gmra.mxu0 %v470
    %v1265 = vpop.f32.mrf.mxu0
    %v1266 = vadd.f32 0.0, %v1265
    %1267 = vmatmul.f32.gmra.mxu0 %v471
    %v1268 = vpop.f32.mrf.mxu0
    %v1269 = vadd.f32 0.0, %v1268
    %1270 = vmatmul.f32.gmra.mxu0 %v472
    %v1271 = vpop.f32.mrf.mxu0
    %v1272 = vadd.f32 0.0, %v1271
    %1273 = vmatmul.f32.gmra.mxu0 %v473
    %v1274 = vpop.f32.mrf.mxu0
    %v1275 = vadd.f32 0.0, %v1274
    %1276 = vmatmul.f32.gmra.mxu0 %v474
    %v1277 = vpop.f32.mrf.mxu0
    %v1278 = vadd.f32 0.0, %v1277
    %1279 = vmatmul.f32.gmra.mxu0 %v475
    %v1280 = vpop.f32.mrf.mxu0
    %v1281 = vadd.f32 0.0, %v1280
    %1282 = vmatmul.f32.gmra.mxu0 %v476
    %v1283 = vpop.f32.mrf.mxu0
    %v1284 = vadd.f32 0.0, %v1283
    %1285 = vmatmul.f32.gmra.mxu0 %v477
    %v1286 = vpop.f32.mrf.mxu0
    %v1287 = vadd.f32 0.0, %v1286
    %1288 = vmatmul.f32.gmra.mxu0 %v478
    %v1289 = vpop.f32.mrf.mxu0
    %v1290 = vadd.f32 0.0, %v1289
    %1291 = vmatmul.f32.gmra.mxu0 %v479
    %v1292 = vpop.f32.mrf.mxu0
    %v1293 = vadd.f32 0.0, %v1292
    %1294 = vmatmul.f32.gmra.mxu0 %v480
    %v1295 = vpop.f32.mrf.mxu0
    %v1296 = vadd.f32 0.0, %v1295
    %1297 = vmatmul.f32.gmra.mxu0 %v481
    %v1298 = vpop.f32.mrf.mxu0
    %v1299 = vadd.f32 0.0, %v1298
    %1300 = vdwg.mxu0
    %v1301 = vmul.f32 %v715, %v1254
    %v1302 = vmul.f32 %v715, %v1257
    %v1303 = vmul.f32 %v715, %v1260
    %v1304 = vmul.f32 %v715, %v1263
    %v1305 = vmul.f32 %v715, %v1266
    %v1306 = vmul.f32 %v715, %v1269
    %v1307 = vmul.f32 %v715, %v1272
    %v1308 = vmul.f32 %v715, %v1275
    %v1309 = vmul.f32 %v715, %v1278
    %v1310 = vmul.f32 %v715, %v1281
    %v1311 = vmul.f32 %v715, %v1284
    %v1312 = vmul.f32 %v715, %v1287
    %v1313 = vmul.f32 %v715, %v1290
    %v1314 = vmul.f32 %v715, %v1293
    %v1315 = vmul.f32 %v715, %v1296
    %v1316 = vmul.f32 %v715, %v1299
    %v1317 = vmul.f32 %v1204, 2.0
    %v1318 = vmul.f32 %v1205, 2.0
    %v1319 = vmul.f32 %v1206, 2.0
    %v1320 = vmul.f32 %v1207, 2.0
    %v1321 = vmul.f32 %v1208, 2.0
    %v1322 = vmul.f32 %v1209, 2.0
    %v1323 = vmul.f32 %v1210, 2.0
    %v1324 = vmul.f32 %v1211, 2.0
    %v1325 = vmul.f32 %v1212, 2.0
    %v1326 = vmul.f32 %v1213, 2.0
    %v1327 = vmul.f32 %v1214, 2.0
    %v1328 = vmul.f32 %v1215, 2.0
    %v1329 = vmul.f32 %v1216, 2.0
    %v1330 = vmul.f32 %v1217, 2.0
    %v1331 = vmul.f32 %v1218, 2.0
    %v1332 = vmul.f32 %v1219, 2.0
    %v1333 = vsub.f32 %v1301, %v1317
    %v1334 = vsub.f32 %v1302, %v1318
    %v1335 = vsub.f32 %v1303, %v1319
    %v1336 = vsub.f32 %v1304, %v1320
    %v1337 = vsub.f32 %v1305, %v1321
    %v1338 = vsub.f32 %v1306, %v1322
    %v1339 = vsub.f32 %v1307, %v1323
    %v1340 = vsub.f32 %v1308, %v1324
    %v1341 = vsub.f32 %v1309, %v1325
    %v1342 = vsub.f32 %v1310, %v1326
    %v1343 = vsub.f32 %v1311, %v1327
    %v1344 = vsub.f32 %v1312, %v1328
    %v1345 = vsub.f32 %v1313, %v1329
    %v1346 = vsub.f32 %v1314, %v1330
    %v1347 = vsub.f32 %v1315, %v1331
    %v1348 = vsub.f32 %v1316, %v1332
    %v1349 = vsub.f32 %v1333, %v1091
    %v1350 = vsub.f32 %v1334, %v1092
    %v1351 = vsub.f32 %v1335, %v1093
    %v1352 = vsub.f32 %v1336, %v1094
    %v1353 = vsub.f32 %v1337, %v1095
    %v1354 = vsub.f32 %v1338, %v1096
    %v1355 = vsub.f32 %v1339, %v1097
    %v1356 = vsub.f32 %v1340, %v1098
    %v1357 = vsub.f32 %v1341, %v1099
    %v1358 = vsub.f32 %v1342, %v1100
    %v1359 = vsub.f32 %v1343, %v1101
    %v1360 = vsub.f32 %v1344, %v1102
    %v1361 = vsub.f32 %v1345, %v1103
    %v1362 = vsub.f32 %v1346, %v1104
    %v1363 = vsub.f32 %v1347, %v1105
    %v1364 = vsub.f32 %v1348, %v1106
    %1365 = vst [vmem:[#allocation3 + $0x10] sm:$0xff] %v1349
    %1366 = vst [vmem:[#allocation3 + $0x28] sm:$0xff] %v1350
    %1367 = vst [vmem:[#allocation3 + $0x40] sm:$0xff] %v1351
    %1368 = vst [vmem:[#allocation3 + $0x58] sm:$0xff] %v1352
    %1369 = vst [vmem:[#allocation3 + $0x70] sm:$0xff] %v1353
    %1370 = vst [vmem:[#allocation3 + $0x88] sm:$0xff] %v1354
    %1371 = vst [vmem:[#allocation3 + $0xa0] sm:$0xff] %v1355
    %1372 = vst [vmem:[#allocation3 + $0xb8] sm:$0xff] %v1356
    %1373 = vst [vmem:[#allocation3 + $0xd0] sm:$0xff] %v1357
    %1374 = vst [vmem:[#allocation3 + $0xe8] sm:$0xff] %v1358
    %1375 = vst [vmem:[#allocation3 + $0x100] sm:$0xff] %v1359
    %1376 = vst [vmem:[#allocation3 + $0x118] sm:$0xff] %v1360
    %1377 = vst [vmem:[#allocation3 + $0x130] sm:$0xff] %v1361
    %1378 = vst [vmem:[#allocation3 + $0x148] sm:$0xff] %v1362
    %1379 = vst [vmem:[#allocation3 + $0x160] sm:$0xff] %v1363
    %1380 = vst [vmem:[#allocation3 + $0x178] sm:$0xff] %v1364
    %v1381 = vld [vmem:[#allocation3] sm:$0xff]
    %v1382 = vld [vmem:[#allocation3 + $0x8] sm:$0xff]
    %v1383 = vld [vmem:[#allocation3 + $0x10] sm:$0xff]
    %v1384 = vld [vmem:[#allocation3 + $0x18] sm:$0xff]
    %v1385 = vld [vmem:[#allocation3 + $0x20] sm:$0xff]
    %v1386 = vld [vmem:[#allocation3 + $0x28] sm:$0xff]
    %v1387 = vld [vmem:[#allocation3 + $0x30] sm:$0xff]
    %v1388 = vld [vmem:[#allocation3 + $0x38] sm:$0xff]
    %v1389 = vld [vmem:[#allocation3 + $0x40] sm:$0xff]
    %v1390 = vld [vmem:[#allocation3 + $0x48] sm:$0xff]
    %v1391 = vld [vmem:[#allocation3 + $0x50] sm:$0xff]
    %v1392 = vld [vmem:[#allocation3 + $0x58] sm:$0xff]
    %v1393 = vld [vmem:[#allocation3 + $0x60] sm:$0xff]
    %v1394 = vld [vmem:[#allocation3 + $0x68] sm:$0xff]
    %v1395 = vld [vmem:[#allocation3 + $0x70] sm:$0xff]
    %v1396 = vld [vmem:[#allocation3 + $0x78] sm:$0xff]
    %v1397 = vld [vmem:[#allocation3 + $0x80] sm:$0xff]
    %v1398 = vld [vmem:[#allocation3 + $0x88] sm:$0xff]
    %v1399 = vld [vmem:[#allocation3 + $0x90] sm:$0xff]
    %v1400 = vld [vmem:[#allocation3 + $0x98] sm:$0xff]
    %v1401 = vld [vmem:[#allocation3 + $0xa0] sm:$0xff]
    %v1402 = vld [vmem:[#allocation3 + $0xa8] sm:$0xff]
    %v1403 = vld [vmem:[#allocation3 + $0xb0] sm:$0xff]
    %v1404 = vld [vmem:[#allocation3 + $0xb8] sm:$0xff]
    %v1405 = vld [vmem:[#allocation3 + $0xc0] sm:$0xff]
    %v1406 = vld [vmem:[#allocation3 + $0xc8] sm:$0xff]
    %v1407 = vld [vmem:[#allocation3 + $0xd0] sm:$0xff]
    %v1408 = vld [vmem:[#allocation3 + $0xd8] sm:$0xff]
    %v1409 = vld [vmem:[#allocation3 + $0xe0] sm:$0xff]
    %v1410 = vld [vmem:[#allocation3 + $0xe8] sm:$0xff]
    %v1411 = vld [vmem:[#allocation3 + $0xf0] sm:$0xff]
    %v1412 = vld [vmem:[#allocation3 + $0xf8] sm:$0xff]
    %v1413 = vld [vmem:[#allocation3 + $0x100] sm:$0xff]
    %v1414 = vld [vmem:[#allocation3 + $0x108] sm:$0xff]
    %v1415 = vld [vmem:[#allocation3 + $0x110] sm:$0xff]
    %v1416 = vld [vmem:[#allocation3 + $0x118] sm:$0xff]
    %v1417 = vld [vmem:[#allocation3 + $0x120] sm:$0xff]
    %v1418 = vld [vmem:[#allocation3 + $0x128] sm:$0xff]
    %v1419 = vld [vmem:[#allocation3 + $0x130] sm:$0xff]
    %v1420 = vld [vmem:[#allocation3 + $0x138] sm:$0xff]
    %v1421 = vld [vmem:[#allocation3 + $0x140] sm:$0xff]
    %v1422 = vld [vmem:[#allocation3 + $0x148] sm:$0xff]
    %v1423 = vld [vmem:[#allocation3 + $0x150] sm:$0xff]
    %v1424 = vld [vmem:[#allocation3 + $0x158] sm:$0xff]
    %v1425 = vld [vmem:[#allocation3 + $0x160] sm:$0xff]
    %v1426 = vld [vmem:[#allocation3 + $0x168] sm:$0xff]
    %v1427 = vld [vmem:[#allocation3 + $0x170] sm:$0xff]
    %v1428 = vld [vmem:[#allocation3 + $0x178] sm:$0xff]
    %v1429 = vld [vmem:[#allocation11] sm:$0xff]
    %v1430 = vld [vmem:[#allocation11 + $0x8] sm:$0xff]
    %v1431 = vld [vmem:[#allocation11 + $0x10] sm:$0xff]
    %v1432 = vld [vmem:[#allocation11 + $0x18] sm:$0xff]
    %v1433 = vld [vmem:[#allocation11 + $0x20] sm:$0xff]
    %v1434 = vld [vmem:[#allocation11 + $0x28] sm:$0xff]
    %v1435 = vld [vmem:[#allocation11 + $0x30] sm:$0xff]
    %v1436 = vld [vmem:[#allocation11 + $0x38] sm:$0xff]
    %v1437 = vld [vmem:[#allocation11 + $0x40] sm:$0xff]
    %v1438 = vld [vmem:[#allocation11 + $0x48] sm:$0xff]
    %v1439 = vld [vmem:[#allocation11 + $0x50] sm:$0xff]
    %v1440 = vld [vmem:[#allocation11 + $0x58] sm:$0xff]
    %v1441 = vld [vmem:[#allocation11 + $0x60] sm:$0xff]
    %v1442 = vld [vmem:[#allocation11 + $0x68] sm:$0xff]
    %v1443 = vld [vmem:[#allocation11 + $0x70] sm:$0xff]
    %v1444 = vld [vmem:[#allocation11 + $0x78] sm:$0xff]
    %v1445 = vld [vmem:[#allocation11 + $0x80] sm:$0xff]
    %v1446 = vld [vmem:[#allocation11 + $0x88] sm:$0xff]
    %v1447 = vld [vmem:[#allocation11 + $0x90] sm:$0xff]
    %v1448 = vld [vmem:[#allocation11 + $0x98] sm:$0xff]
    %v1449 = vld [vmem:[#allocation11 + $0xa0] sm:$0xff]
    %v1450 = vld [vmem:[#allocation11 + $0xa8] sm:$0xff]
    %v1451 = vld [vmem:[#allocation11 + $0xb0] sm:$0xff]
    %v1452 = vld [vmem:[#allocation11 + $0xb8] sm:$0xff]
    %v1453 = vld [vmem:[#allocation11 + $0xc0] sm:$0xff]
    %v1454 = vld [vmem:[#allocation11 + $0xc8] sm:$0xff]
    %v1455 = vld [vmem:[#allocation11 + $0xd0] sm:$0xff]
    %v1456 = vld [vmem:[#allocation11 + $0xd8] sm:$0xff]
    %v1457 = vld [vmem:[#allocation11 + $0xe0] sm:$0xff]
    %v1458 = vld [vmem:[#allocation11 + $0xe8] sm:$0xff]
    %v1459 = vld [vmem:[#allocation11 + $0xf0] sm:$0xff]
    %v1460 = vld [vmem:[#allocation11 + $0xf8] sm:$0xff]
    %v1461 = vld [vmem:[#allocation11 + $0x100] sm:$0xff]
    %v1462 = vld [vmem:[#allocation11 + $0x108] sm:$0xff]
    %v1463 = vld [vmem:[#allocation11 + $0x110] sm:$0xff]
    %v1464 = vld [vmem:[#allocation11 + $0x118] sm:$0xff]
    %v1465 = vld [vmem:[#allocation11 + $0x120] sm:$0xff]
    %v1466 = vld [vmem:[#allocation11 + $0x128] sm:$0xff]
    %v1467 = vld [vmem:[#allocation11 + $0x130] sm:$0xff]
    %v1468 = vld [vmem:[#allocation11 + $0x138] sm:$0xff]
    %v1469 = vld [vmem:[#allocation11 + $0x140] sm:$0xff]
    %v1470 = vld [vmem:[#allocation11 + $0x148] sm:$0xff]
    %v1471 = vld [vmem:[#allocation11 + $0x150] sm:$0xff]
    %v1472 = vld [vmem:[#allocation11 + $0x158] sm:$0xff]
    %v1473 = vld [vmem:[#allocation11 + $0x160] sm:$0xff]
    %v1474 = vld [vmem:[#allocation11 + $0x168] sm:$0xff]
    %v1475 = vld [vmem:[#allocation11 + $0x170] sm:$0xff]
    %v1476 = vld [vmem:[#allocation11 + $0x178] sm:$0xff]
    %v1477 = vld [vmem:[%s6] sm:$0x1]
    %v1479 = vperm.slane %v1477, 0
    %1481 = vmatpush.msra.mxu0 %v1444
    %1482 = vmatpush.msra.mxu0 %v1443
    %1483 = vmatpush.msra.mxu0 %v1442
    %1484 = vmatpush.msra.mxu0 %v1441
    %1485 = vmatpush.msra.mxu0 %v1440
    %1486 = vmatpush.msra.mxu0 %v1439
    %1487 = vmatpush.msra.mxu0 %v1438
    %1488 = vmatpush.msra.mxu0 %v1437
    %1489 = vmatpush.msra.mxu0 %v1436
    %1490 = vmatpush.msra.mxu0 %v1435
    %1491 = vmatpush.msra.mxu0 %v1434
    %1492 = vmatpush.msra.mxu0 %v1433
    %1493 = vmatpush.msra.mxu0 %v1432
    %1494 = vmatpush.msra.mxu0 %v1431
    %1495 = vmatpush.msra.mxu0 %v1430
    %1496 = vmatpush.msra.mxu0 %v1429
    %1497 = vmatmul.f32.gmra.mxu0 %v1381
    %v1498 = vpop.f32.mrf.mxu0
    %v1499 = vadd.f32 %v1479, %v1498
    %1500 = vmatmul.f32.gmra.mxu0 %v1384
    %v1501 = vpop.f32.mrf.mxu0
    %v1502 = vadd.f32 %v1479, %v1501
    %1503 = vmatmul.f32.gmra.mxu0 %v1387
    %v1504 = vpop.f32.mrf.mxu0
    %v1505 = vadd.f32 %v1479, %v1504
    %1506 = vmatmul.f32.gmra.mxu0 %v1390
    %v1507 = vpop.f32.mrf.mxu0
    %v1508 = vadd.f32 %v1479, %v1507
    %1509 = vmatmul.f32.gmra.mxu0 %v1393
    %v1510 = vpop.f32.mrf.mxu0
    %v1511 = vadd.f32 %v1479, %v1510
    %1512 = vmatmul.f32.gmra.mxu0 %v1396
    %v1513 = vpop.f32.mrf.mxu0
    %v1514 = vadd.f32 %v1479, %v1513
    %1515 = vmatmul.f32.gmra.mxu0 %v1399
    %v1516 = vpop.f32.mrf.mxu0
    %v1517 = vadd.f32 %v1479, %v1516
    %1518 = vmatmul.f32.gmra.mxu0 %v1402
    %v1519 = vpop.f32.mrf.mxu0
    %v1520 = vadd.f32 %v1479, %v1519
    %1521 = vmatmul.f32.gmra.mxu0 %v1405
    %v1522 = vpop.f32.mrf.mxu0
    %v1523 = vadd.f32 %v1479, %v1522
    %1524 = vmatmul.f32.gmra.mxu0 %v1408
    %v1525 = vpop.f32.mrf.mxu0
    %v1526 = vadd.f32 %v1479, %v1525
    %1527 = vmatmul.f32.gmra.mxu0 %v1411
    %v1528 = vpop.f32.mrf.mxu0
    %v1529 = vadd.f32 %v1479, %v1528
    %1530 = vmatmul.f32.gmra.mxu0 %v1414
    %v1531 = vpop.f32.mrf.mxu0
    %v1532 = vadd.f32 %v1479, %v1531
    %1533 = vmatmul.f32.gmra.mxu0 %v1417
    %v1534 = vpop.f32.mrf.mxu0
    %v1535 = vadd.f32 %v1479, %v1534
    %1536 = vmatmul.f32.gmra.mxu0 %v1420
    %v1537 = vpop.f32.mrf.mxu0
    %v1538 = vadd.f32 %v1479, %v1537
    %1539 = vmatmul.f32.gmra.mxu0 %v1423
    %v1540 = vpop.f32.mrf.mxu0
    %v1541 = vadd.f32 %v1479, %v1540
    %1542 = vmatmul.f32.gmra.mxu0 %v1426
    %v1543 = vpop.f32.mrf.mxu0
    %v1544 = vadd.f32 %v1479, %v1543
    %1545 = vdwg.mxu0
    %1546 = vmatpush.msra.mxu0 %v1460
    %1547 = vmatpush.msra.mxu0 %v1459
    %1548 = vmatpush.msra.mxu0 %v1458
    %1549 = vmatpush.msra.mxu0 %v1457
    %1550 = vmatpush.msra.mxu0 %v1456
    %1551 = vmatpush.msra.mxu0 %v1455
    %1552 = vmatpush.msra.mxu0 %v1454
    %1553 = vmatpush.msra.mxu0 %v1453
    %1554 = vmatpush.msra.mxu0 %v1452
    %1555 = vmatpush.msra.mxu0 %v1451
    %1556 = vmatpush.msra.mxu0 %v1450
    %1557 = vmatpush.msra.mxu0 %v1449
    %1558 = vmatpush.msra.mxu0 %v1448
    %1559 = vmatpush.msra.mxu0 %v1447
    %1560 = vmatpush.msra.mxu0 %v1446
    %1561 = vmatpush.msra.mxu0 %v1445
    %1562 = vmatmul.f32.gmra.mxu0 %v1382
    %v1563 = vpop.f32.mrf.mxu0
    %v1564 = vadd.f32 %v1499, %v1563
    %1565 = vmatmul.f32.gmra.mxu0 %v1385
    %v1566 = vpop.f32.mrf.mxu0
    %v1567 = vadd.f32 %v1502, %v1566
    %1568 = vmatmul.f32.gmra.mxu0 %v1388
    %v1569 = vpop.f32.mrf.mxu0
    %v1570 = vadd.f32 %v1505, %v1569
    %1571 = vmatmul.f32.gmra.mxu0 %v1391
    %v1572 = vpop.f32.mrf.mxu0
    %v1573 = vadd.f32 %v1508, %v1572
    %1574 = vmatmul.f32.gmra.mxu0 %v1394
    %v1575 = vpop.f32.mrf.mxu0
    %v1576 = vadd.f32 %v1511, %v1575
    %1577 = vmatmul.f32.gmra.mxu0 %v1397
    %v1578 = vpop.f32.mrf.mxu0
    %v1579 = vadd.f32 %v1514, %v1578
    %1580 = vmatmul.f32.gmra.mxu0 %v1400
    %v1581 = vpop.f32.mrf.mxu0
    %v1582 = vadd.f32 %v1517, %v1581
    %1583 = vmatmul.f32.gmra.mxu0 %v1403
    %v1584 = vpop.f32.mrf.mxu0
    %v1585 = vadd.f32 %v1520, %v1584
    %1586 = vmatmul.f32.gmra.mxu0 %v1406
    %v1587 = vpop.f32.mrf.mxu0
    %v1588 = vadd.f32 %v1523, %v1587
    %1589 = vmatmul.f32.gmra.mxu0 %v1409
    %v1590 = vpop.f32.mrf.mxu0
    %v1591 = vadd.f32 %v1526, %v1590
    %1592 = vmatmul.f32.gmra.mxu0 %v1412
    %v1593 = vpop.f32.mrf.mxu0
    %v1594 = vadd.f32 %v1529, %v1593
    %1595 = vmatmul.f32.gmra.mxu0 %v1415
    %v1596 = vpop.f32.mrf.mxu0
    %v1597 = vadd.f32 %v1532, %v1596
    %1598 = vmatmul.f32.gmra.mxu0 %v1418
    %v1599 = vpop.f32.mrf.mxu0
    %v1600 = vadd.f32 %v1535, %v1599
    %1601 = vmatmul.f32.gmra.mxu0 %v1421
    %v1602 = vpop.f32.mrf.mxu0
    %v1603 = vadd.f32 %v1538, %v1602
    %1604 = vmatmul.f32.gmra.mxu0 %v1424
    %v1605 = vpop.f32.mrf.mxu0
    %v1606 = vadd.f32 %v1541, %v1605
    %1607 = vmatmul.f32.gmra.mxu0 %v1427
    %v1608 = vpop.f32.mrf.mxu0
    %v1609 = vadd.f32 %v1544, %v1608
    %1610 = vdwg.mxu0
    %1611 = vmatpush.msra.mxu0 %v1476
    %1612 = vmatpush.msra.mxu0 %v1475
    %1613 = vmatpush.msra.mxu0 %v1474
    %1614 = vmatpush.msra.mxu0 %v1473
    %1615 = vmatpush.msra.mxu0 %v1472
    %1616 = vmatpush.msra.mxu0 %v1471
    %1617 = vmatpush.msra.mxu0 %v1470
    %1618 = vmatpush.msra.mxu0 %v1469
    %1619 = vmatpush.msra.mxu0 %v1468
    %1620 = vmatpush.msra.mxu0 %v1467
    %1621 = vmatpush.msra.mxu0 %v1466
    %1622 = vmatpush.msra.mxu0 %v1465
    %1623 = vmatpush.msra.mxu0 %v1464
    %1624 = vmatpush.msra.mxu0 %v1463
    %1625 = vmatpush.msra.mxu0 %v1462
    %1626 = vmatpush.msra.mxu0 %v1461
    %1627 = vmatmul.f32.gmra.mxu0 %v1383
    %v1628 = vpop.f32.mrf.mxu0
    %v1629 = vadd.f32 %v1564, %v1628
    %1630 = vmatmul.f32.gmra.mxu0 %v1386
    %v1631 = vpop.f32.mrf.mxu0
    %v1632 = vadd.f32 %v1567, %v1631
    %1633 = vmatmul.f32.gmra.mxu0 %v1389
    %v1634 = vpop.f32.mrf.mxu0
    %v1635 = vadd.f32 %v1570, %v1634
    %1636 = vmatmul.f32.gmra.mxu0 %v1392
    %v1637 = vpop.f32.mrf.mxu0
    %v1638 = vadd.f32 %v1573, %v1637
    %1639 = vmatmul.f32.gmra.mxu0 %v1395
    %v1640 = vpop.f32.mrf.mxu0
    %v1641 = vadd.f32 %v1576, %v1640
    %1642 = vmatmul.f32.gmra.mxu0 %v1398
    %v1643 = vpop.f32.mrf.mxu0
    %v1644 = vadd.f32 %v1579, %v1643
    %1645 = vmatmul.f32.gmra.mxu0 %v1401
    %v1646 = vpop.f32.mrf.mxu0
    %v1647 = vadd.f32 %v1582, %v1646
    %1648 = vmatmul.f32.gmra.mxu0 %v1404
    %v1649 = vpop.f32.mrf.mxu0
    %v1650 = vadd.f32 %v1585, %v1649
    %1651 = vmatmul.f32.gmra.mxu0 %v1407
    %v1652 = vpop.f32.mrf.mxu0
    %v1653 = vadd.f32 %v1588, %v1652
    %1654 = vmatmul.f32.gmra.mxu0 %v1410
    %v1655 = vpop.f32.mrf.mxu0
    %v1656 = vadd.f32 %v1591, %v1655
    %1657 = vmatmul.f32.gmra.mxu0 %v1413
    %v1658 = vpop.f32.mrf.mxu0
    %v1659 = vadd.f32 %v1594, %v1658
    %1660 = vmatmul.f32.gmra.mxu0 %v1416
    %v1661 = vpop.f32.mrf.mxu0
    %v1662 = vadd.f32 %v1597, %v1661
    %1663 = vmatmul.f32.gmra.mxu0 %v1419
    %v1664 = vpop.f32.mrf.mxu0
    %v1665 = vadd.f32 %v1600, %v1664
    %1666 = vmatmul.f32.gmra.mxu0 %v1422
    %v1667 = vpop.f32.mrf.mxu0
    %v1668 = vadd.f32 %v1603, %v1667
    %1669 = vmatmul.f32.gmra.mxu0 %v1425
    %v1670 = vpop.f32.mrf.mxu0
    %v1671 = vadd.f32 %v1606, %v1670
    %1672 = vmatmul.f32.gmra.mxu0 %v1428
    %v1673 = vpop.f32.mrf.mxu0
    %v1674 = vadd.f32 %v1609, %v1673
    %1675 = vdwg.mxu0
    %1676 = vst [vmem:[#allocation13] sm:$0xff] %v1629
    %1677 = vst [vmem:[#allocation13 + $0x8] sm:$0xff] %v1632
    %1678 = vst [vmem:[#allocation13 + $0x10] sm:$0xff] %v1635
    %1679 = vst [vmem:[#allocation13 + $0x18] sm:$0xff] %v1638
    %1680 = vst [vmem:[#allocation13 + $0x20] sm:$0xff] %v1641
    %1681 = vst [vmem:[#allocation13 + $0x28] sm:$0xff] %v1644
    %1682 = vst [vmem:[#allocation13 + $0x30] sm:$0xff] %v1647
    %1683 = vst [vmem:[#allocation13 + $0x38] sm:$0xff] %v1650
    %1684 = vst [vmem:[#allocation13 + $0x40] sm:$0xff] %v1653
    %1685 = vst [vmem:[#allocation13 + $0x48] sm:$0xff] %v1656
    %1686 = vst [vmem:[#allocation13 + $0x50] sm:$0xff] %v1659
    %1687 = vst [vmem:[#allocation13 + $0x58] sm:$0xff] %v1662
    %1688 = vst [vmem:[#allocation13 + $0x60] sm:$0xff] %v1665
    %1689 = vst [vmem:[#allocation13 + $0x68] sm:$0xff] %v1668
    %1690 = vst [vmem:[#allocation13 + $0x70] sm:$0xff] %v1671
    %1691 = vst [vmem:[#allocation13 + $0x78] sm:$0xff] %v1674
    // Predicated region
    $region46: #{tpu_custom_call.1} parent=1 // pred_check
      _
    $region47: #{tpu_custom_call.1} parent=1 // pred_check_branch
      %1693 = sbr.rel (0) target = $region49
    $region48: #{tpu_custom_call.1} parent=1 // pred_region
      %1695 = vsyncadd [#allocation7], 0
      %s1696 = sshll.u32 [#allocation13], 4
      %s1697 = int_to_ptr.vmem [resolvable:$true] %s1696
      %s1698 = sshll.u32 %s7, 4
      %s1699 = int_to_ptr.hbm [resolvable:$true] %s1698
      %1704 = dma.vmem_to_hbm [thread:$0]  %s1697, 2048, %s1699, [#allocation7], 128, 128, 8
    $region49: #{tpu_custom_call.1} parent=1 // pred_fallthru
      _
    // Predicated region
    $region50: #{tpu_custom_call.1} parent=1 // pred_check
      _
    $region51: #{tpu_custom_call.1} parent=1 // pred_check_branch
      %1706 = sbr.rel (0) target = $region53
    $region52: #{tpu_custom_call.1} parent=1 // pred_region
      %1708 = vsyncadd [#allocation15], 0
      %s1710 = sshll.u32 [#allocation14], 4
      %s1711 = int_to_ptr.vmem [resolvable:$true] %s1710
      %s1712 = sshll.u32 %s8, 4
      %s1713 = int_to_ptr.hbm [resolvable:$true] %s1712
      %1715 = dma.vmem_to_hbm [thread:$0]  %s1711, 16, %s1713, [#allocation15]
    $region53: #{tpu_custom_call.1} parent=1 // pred_fallthru
      _
    // Predicated region
    $region54: #{tpu_custom_call.1} parent=1 // pred_check
      _
    $region55: #{tpu_custom_call.1} parent=1 // pred_check_branch
      %1717 = sbr.rel (0) target = $region57
    $region56: #{tpu_custom_call.1} parent=1 // pred_region
      %1719 = dma.done [#allocation7], 2048
    $region57: #{tpu_custom_call.1} parent=1 // pred_fallthru
      _
    // Predicated region
    $region58: #{tpu_custom_call.1} parent=1 // pred_check
      _
    $region59: #{tpu_custom_call.1} parent=1 // pred_check_branch
      %1721 = sbr.rel (0) target = $region61
    $region60: #{tpu_custom_call.1} parent=1 // pred_region
      %1723 = dma.done [#allocation15], 16
    $region61: #{tpu_custom_call.1} parent=1 // pred_fallthru
      _
    %1724 = vsyncpa [#allocation6], 1
    %1725 = vsyncpa [#allocation9], 1
    %1726 = vsyncpa [#allocation12], 1
    %1727 = vsyncpa [#allocation7], 1
    %1728 = vsyncpa [#allocation15], 1

</llo_original>
